<compile_context>
chip_gen: v7x
topology: tpu7x:2x2x1
jax: 0.10.0
libtpu: 0.0.40
codegen_flags: <defaults>
</compile_context>

<pallas_src>
import functools

import jax
import jax.numpy as jnp
from jax.experimental import pallas as pl
from jax.experimental.pallas import tpu as pltpu

_LANE = 128
_VMEM_LIMIT = 48 * 1024 * 1024   # explicit budget; fits v7x's 64 MiB physical VMEM


def _conv_stats_kernel(x_ref, w_ref, conv_ref, stats_ref, *, KH, KW, pad):
    """Pass 1: 3x3 conv (one im2col matmul) + per-tile BN partial statistics.

    x_ref:     (1, H, W, Cin)        one batch element, NHWC, f32
    w_ref:     (KH*KW*Cin, Cout_p)   bf16 weights, rows ordered (kh, kw, ci)
    conv_ref:  (1, Ho, Wo, Cout_p)   f32 conv output (pre-BN)
    stats_ref: (1, 8, Cout_p)        row 0 = per-channel sum, row 1 = sum of squares
    """
    _, H, W, Cin = x_ref.shape
    _, Ho, Wo, Cout = conv_ref.shape

    x = x_ref[0]                                              # (H, W, Cin) f32

    # Zero-pad the halo on the resident VMEM tile (no wrapper-side jnp.pad).
    if pad > 0:
        zr = jnp.zeros((pad, W, Cin), x.dtype)
        x = jnp.concatenate([zr, x, zr], axis=0)              # (H+2p, W, Cin)
        zc = jnp.zeros((H + 2 * pad, pad, Cin), x.dtype)
        x = jnp.concatenate([zc, x, zc], axis=1)              # (H+2p, W+2p, Cin)

    # im2col: a single MXU matmul with K = KH*KW*Cin instead of KH*KW shallow ones.
    cols = []
    for kh in range(KH):
        for kw in range(KW):
            cols.append(x[kh:kh + Ho, kw:kw + Wo, :])         # (Ho, Wo, Cin)
    patch = jnp.concatenate(cols, axis=-1)                    # (Ho, Wo, KH*KW*Cin)
    patch = patch.reshape(Ho * Wo, KH * KW * Cin)

    acc = jnp.dot(patch.astype(jnp.bfloat16), w_ref[...],
                  preferred_element_type=jnp.float32)         # (Ho*Wo, Cout_p) f32

    conv_ref[...] = acc.reshape(1, Ho, Wo, Cout)

    # Per-channel partial statistics for train-mode BatchNorm (reduced in wrapper).
    s = jnp.sum(acc, axis=0, keepdims=True)                   # (1, Cout_p)
    sq = jnp.sum(acc * acc, axis=0, keepdims=True)            # (1, Cout_p)
    fill = jnp.zeros((6, Cout), jnp.float32)
    stats_ref[...] = jnp.concatenate([s, sq, fill], axis=0).reshape(1, 8, Cout)


def _bn_relu_kernel(conv_ref, scale_ref, shift_ref, o_ref):
    """Pass 2: y = relu(conv * scale + shift) with the BN affine pre-folded."""
    c = o_ref.shape[-1]
    scale = scale_ref[...].reshape(1, 1, 1, c)
    shift = shift_ref[...].reshape(1, 1, 1, c)
    o_ref[...] = jnp.maximum(conv_ref[...] * scale + shift, 0.0)


@functools.partial(jax.jit, static_argnames=("stride", "padding", "eps"))
def conv_block_forward(x_nchw, w_oihw, bias, gamma, beta, *,
                       stride=1, padding=1, eps=1e-5):
    """PyTorch conv_block forward: Conv2d -> BatchNorm2d (train mode) -> ReLU."""
    N, Cin, H, W = x_nchw.shape
    Cout, Cin_w, KH, KW = w_oihw.shape
    assert Cin == Cin_w
    assert stride == 1  # TODO(synk): stride=2 conv_block variants of Inception-v4 not implemented.

    Ho = H + 2 * padding - KH + 1
    Wo = W + 2 * padding - KW + 1
    Cout_p = ((Cout + _LANE - 1) // _LANE) * _LANE            # lane-dense output channels
    K = KH * KW * Cin

    # NCHW -> NHWC (lane dim = channels): unavoidable glue at the PyTorch boundary.
    x = jnp.transpose(x_nchw, (0, 2, 3, 1)).astype(jnp.float32)

    # OIHW -> (KH*KW*Cin, Cout_p), bf16 for the MXU, zero-padded output channels.
    w = jnp.transpose(w_oihw, (2, 3, 1, 0)).reshape(K, Cout)
    w = jnp.pad(w, ((0, 0), (0, Cout_p - Cout))).astype(jnp.bfloat16)

    # Conv bias cancels exactly under train-mode BN (mean subtraction) -> drop it.
    del bias

    conv_out, stats = pl.pallas_call(
        functools.partial(_conv_stats_kernel, KH=KH, KW=KW, pad=padding),
        grid=(N,),
        in_specs=[
            pl.BlockSpec((1, H, W, Cin), lambda n: (n, 0, 0, 0)),
            pl.BlockSpec((K, Cout_p), lambda n: (0, 0)),
        ],
        out_specs=(
            pl.BlockSpec((1, Ho, Wo, Cout_p), lambda n: (n, 0, 0, 0)),
            pl.BlockSpec((1, 8, Cout_p), lambda n: (n, 0, 0)),
        ),
        out_shape=(
            jax.ShapeDtypeStruct((N, Ho, Wo, Cout_p), jnp.float32),
            jax.ShapeDtypeStruct((N, 8, Cout_p), jnp.float32),
        ),
        compiler_params=pltpu.CompilerParams(
            dimension_semantics=("parallel",),
            vmem_limit_bytes=_VMEM_LIMIT),
        cost_estimate=pl.CostEstimate(
            flops=2 * N * Ho * Wo * K * Cout_p,
            transcendentals=0,
            bytes_accessed=(N * H * W * Cin * 4 + K * Cout_p * 2
                            + N * Ho * Wo * Cout_p * 4 + N * 8 * Cout_p * 4)),
    )(x, w)

    # Tiny O(Cout) cross-tile reduction + BN affine fold (biased variance, train mode).
    cnt = jnp.float32(N * Ho * Wo)
    mean = jnp.sum(stats[:, 0, :], axis=0) / cnt                       # (Cout_p,)
    var = jnp.maximum(jnp.sum(stats[:, 1, :], axis=0) / cnt - mean * mean, 0.0)
    gamma_p = jnp.pad(gamma.astype(jnp.float32), (0, Cout_p - Cout))
    beta_p = jnp.pad(beta.astype(jnp.float32), (0, Cout_p - Cout))
    scale = gamma_p * jax.lax.rsqrt(var + eps)
    shift = beta_p - mean * scale
    scale = scale.reshape(1, Cout_p)
    shift = shift.reshape(1, Cout_p)

    out_nhwc = pl.pallas_call(
        _bn_relu_kernel,
        grid=(N,),
        in_specs=[
            pl.BlockSpec((1, Ho, Wo, Cout_p), lambda n: (n, 0, 0, 0)),
            pl.BlockSpec((1, Cout_p), lambda n: (0, 0)),
            pl.BlockSpec((1, Cout_p), lambda n: (0, 0)),
        ],
        out_specs=pl.BlockSpec((1, Ho, Wo, Cout_p), lambda n: (n, 0, 0, 0)),
        out_shape=jax.ShapeDtypeStruct((N, Ho, Wo, Cout_p), jnp.float32),
        compiler_params=pltpu.CompilerParams(
            dimension_semantics=("parallel",),
            vmem_limit_bytes=_VMEM_LIMIT),
        cost_estimate=pl.CostEstimate(
            flops=3 * N * Ho * Wo * Cout_p,
            transcendentals=0,
            bytes_accessed=2 * N * Ho * Wo * Cout_p * 4),
    )(conv_out, scale, shift)

    # Strip channel padding, NHWC -> NCHW at the PyTorch boundary.
    return jnp.transpose(out_nhwc[..., :Cout], (0, 3, 1, 2))


def _reference_forward(x_nchw, w_oihw, bias, gamma, beta, *, padding=1, eps=1e-5):
    """Pure-JAX reference matching PyTorch conv_block (train-mode BN, biased var)."""
    y = jax.lax.conv_general_dilated(
        x_nchw, w_oihw, window_strides=(1, 1),
        padding=[(padding, padding), (padding, padding)],
        dimension_numbers=('NCHW', 'OIHW', 'NCHW'))
    y = y + bias[None, :, None, None]
    mean = y.mean(axis=(0, 2, 3), keepdims=True)
    var = jnp.square(y - mean).mean(axis=(0, 2, 3), keepdims=True)
    yn = (y - mean) * jax.lax.rsqrt(var + eps)
    yn = yn * gamma[None, :, None, None] + beta[None, :, None, None]
    return jnp.maximum(yn, 0.0)


if __name__ == "__main__":
    # Small shapes consistent with conv_block(4, 8, kernel_size=3, stride=1, padding=1)
    # applied to x of shape (2, 4, 16, 16).
    N, Cin, H, W = 2, 4, 16, 16
    Cout, KH, KW = 8, 3, 3

    key = jax.random.PRNGKey(0)
    kx, kw, kb = jax.random.split(key, 3)

    x = jax.random.normal(kx, (N, Cin, H, W), dtype=jnp.float32)
    conv_w = jax.random.normal(kw, (Cout, Cin, KH, KW), dtype=jnp.float32) * 0.1
    conv_b = jax.random.normal(kb, (Cout,), dtype=jnp.float32) * 0.1
    gamma = jnp.ones((Cout,), dtype=jnp.float32)   # BatchNorm2d default init
    beta = jnp.zeros((Cout,), dtype=jnp.float32)   # BatchNorm2d default init

    out = conv_block_forward(x, conv_w, conv_b, gamma, beta, padding=1)
    out = jax.block_until_ready(out)

    ref = _reference_forward(x, conv_w, conv_b, gamma, beta, padding=1)
    assert out.shape == (N, Cout, H, W)
    # bf16 MXU inputs with f32 accumulation -> slightly looser tolerance than pure f32.
    err = float(jnp.max(jnp.abs(out - ref)))
    assert jnp.allclose(out, ref, atol=3e-2, rtol=3e-2), f"max abs diff {err}"

    print("KERNEL_OK")
</pallas_src>

<mosaic_0001>
module attributes {stable_mosaic.version = 11 : i64} {
  func.func @_bn_relu_kernel(%arg0: i32, %arg1: memref<1x16x16x128xf32, #tpu.memory_space<vmem>>, %arg2: memref<1x128xf32, #tpu.memory_space<vmem>>, %arg3: memref<1x128xf32, #tpu.memory_space<vmem>>, %arg4: memref<1x16x16x128xf32, #tpu.memory_space<vmem>>) attributes {dimension_semantics = [#tpu.dimension_semantics<parallel>], iteration_bounds = array<i64: 2>, scalar_prefetch = 0 : i64, scratch_operands = 0 : i64, tpu.core_type = #tpu.core_type<tc>, window_params = [{transform_indices = @transform_0, window_bounds = array<i64: 1, 16, 16, 128>}, {pipeline_mode = #tpu.pipeline_mode<synchronous>, transform_indices = @transform_1, window_bounds = array<i64: 1, 128>}, {pipeline_mode = #tpu.pipeline_mode<synchronous>, transform_indices = @transform_2, window_bounds = array<i64: 1, 128>}, {transform_indices = @transform_3, window_bounds = array<i64: 1, 16, 16, 128>}]} {
    %c0 = arith.constant 0 : index
    %c0_0 = arith.constant 0 : index
    %0 = vector.load %arg2[%c0, %c0_0] : memref<1x128xf32, #tpu.memory_space<vmem>>, vector<1x128xf32>
    %1 = vector.shape_cast %0 : vector<1x128xf32> to vector<1x1x1x128xf32>
    %c0_1 = arith.constant 0 : index
    %c0_2 = arith.constant 0 : index
    %2 = vector.load %arg3[%c0_1, %c0_2] : memref<1x128xf32, #tpu.memory_space<vmem>>, vector<1x128xf32>
    %3 = vector.shape_cast %2 : vector<1x128xf32> to vector<1x1x1x128xf32>
    %c0_3 = arith.constant 0 : index
    %c0_4 = arith.constant 0 : index
    %c0_5 = arith.constant 0 : index
    %c0_6 = arith.constant 0 : index
    %4 = vector.load %arg1[%c0_3, %c0_4, %c0_5, %c0_6] : memref<1x16x16x128xf32, #tpu.memory_space<vmem>>, vector<1x16x16x128xf32>
    %5 = vector.broadcast %1 : vector<1x1x1x128xf32> to vector<1x16x16x128xf32>
    %6 = arith.mulf %4, %5 : vector<1x16x16x128xf32>
    %7 = vector.broadcast %3 : vector<1x1x1x128xf32> to vector<1x16x16x128xf32>
    %8 = arith.addf %6, %7 : vector<1x16x16x128xf32>
    %cst = arith.constant 0.000000e+00 : f32
    %9 = vector.broadcast %cst : f32 to vector<1x16x16x128xf32>
    %10 = arith.maximumf %8, %9 : vector<1x16x16x128xf32>
    %c0_7 = arith.constant 0 : index
    %c0_8 = arith.constant 0 : index
    %c0_9 = arith.constant 0 : index
    %c0_10 = arith.constant 0 : index
    %11 = vector.load %arg4[%c0_7, %c0_8, %c0_9, %c0_10] : memref<1x16x16x128xf32, #tpu.memory_space<vmem>>, vector<1x16x16x128xf32>
    tpu.vector_store %arg4[%c0_7, %c0_8, %c0_9, %c0_10], %10 {strides = array<i32>} : memref<1x16x16x128xf32, #tpu.memory_space<vmem>>, vector<1x16x16x128xf32>,
    return
  }
  func.func @transform_0(%arg0: i32) -> (i32, i32, i32, i32) {
    %c0_i32 = arith.constant 0 : i32
    %c0_i32_0 = arith.constant 0 : i32
    %c0_i32_1 = arith.constant 0 : i32
    %c0_i32_2 = arith.constant 0 : i32
    return %arg0, %c0_i32, %c0_i32_0, %c0_i32_1 : i32, i32, i32, i32
  }
  func.func @transform_1(%arg0: i32) -> (i32, i32) {
    %c0_i32 = arith.constant 0 : i32
    %c0_i32_0 = arith.constant 0 : i32
    %c0_i32_1 = arith.constant 0 : i32
    return %c0_i32, %c0_i32_0 : i32, i32
  }
  func.func @transform_2(%arg0: i32) -> (i32, i32) {
    %c0_i32 = arith.constant 0 : i32
    %c0_i32_0 = arith.constant 0 : i32
    %c0_i32_1 = arith.constant 0 : i32
    return %c0_i32, %c0_i32_0 : i32, i32
  }
  func.func @transform_3(%arg0: i32) -> (i32, i32, i32, i32) {
    %c0_i32 = arith.constant 0 : i32
    %c0_i32_0 = arith.constant 0 : i32
    %c0_i32_1 = arith.constant 0 : i32
    %c0_i32_2 = arith.constant 0 : i32
    return %arg0, %c0_i32, %c0_i32_0, %c0_i32_1 : i32, i32, i32, i32
  }
}

module attributes {stable_mosaic.version = 11 : i64} {
  func.func @_conv_stats_kernel(%arg0: i32, %arg1: memref<1x16x16x4xf32, #tpu.memory_space<vmem>>, %arg2: memref<36x128xbf16, #tpu.memory_space<vmem>>, %arg3: memref<1x16x16x128xf32, #tpu.memory_space<vmem>>, %arg4: memref<1x8x128xf32, #tpu.memory_space<vmem>>) attributes {dimension_semantics = [#tpu.dimension_semantics<parallel>], iteration_bounds = array<i64: 2>, scalar_prefetch = 0 : i64, scratch_operands = 0 : i64, tpu.core_type = #tpu.core_type<tc>, window_params = [{transform_indices = @transform_0, window_bounds = array<i64: 1, 16, 16, 4>}, {pipeline_mode = #tpu.pipeline_mode<synchronous>, transform_indices = @transform_1, window_bounds = array<i64: 36, 128>}, {transform_indices = @transform_2, window_bounds = array<i64: 1, 16, 16, 128>}, {transform_indices = @transform_3, window_bounds = array<i64: 1, 8, 128>}]} {
    %c0 = arith.constant 0 : index
    %c0_0 = arith.constant 0 : index
    %c0_1 = arith.constant 0 : index
    %c0_2 = arith.constant 0 : index
    %0 = vector.load %arg1[%c0, %c0_0, %c0_1, %c0_2] : memref<1x16x16x4xf32, #tpu.memory_space<vmem>>, vector<1x16x16x4xf32>
    %1 = vector.shape_cast %0 : vector<1x16x16x4xf32> to vector<16x16x4xf32>
    %cst = arith.constant 0.000000e+00 : f32
    %2 = vector.broadcast %cst : f32 to vector<1x16x4xf32>
    %3 = tpu.concatenate %2, %1, %2 in 0 : vector<1x16x4xf32>, vector<16x16x4xf32>, vector<1x16x4xf32> -> vector<18x16x4xf32>
    %cst_3 = arith.constant 0.000000e+00 : f32
    %4 = vector.broadcast %cst_3 : f32 to vector<18x1x4xf32>
    %5 = tpu.concatenate %4, %3, %4 in 1 : vector<18x1x4xf32>, vector<18x16x4xf32>, vector<18x1x4xf32> -> vector<18x18x4xf32>
    %6 = vector.extract_strided_slice %5 {offsets = [0, 0, 0], sizes = [16, 16, 4], strides = [1, 1, 1]} : vector<18x18x4xf32> to vector<16x16x4xf32>
    %7 = vector.extract_strided_slice %5 {offsets = [0, 1, 0], sizes = [16, 16, 4], strides = [1, 1, 1]} : vector<18x18x4xf32> to vector<16x16x4xf32>
    %8 = vector.extract_strided_slice %5 {offsets = [0, 2, 0], sizes = [16, 16, 4], strides = [1, 1, 1]} : vector<18x18x4xf32> to vector<16x16x4xf32>
    %9 = vector.extract_strided_slice %5 {offsets = [1, 0, 0], sizes = [16, 16, 4], strides = [1, 1, 1]} : vector<18x18x4xf32> to vector<16x16x4xf32>
    %10 = vector.extract_strided_slice %5 {offsets = [1, 1, 0], sizes = [16, 16, 4], strides = [1, 1, 1]} : vector<18x18x4xf32> to vector<16x16x4xf32>
    %11 = vector.extract_strided_slice %5 {offsets = [1, 2, 0], sizes = [16, 16, 4], strides = [1, 1, 1]} : vector<18x18x4xf32> to vector<16x16x4xf32>
    %12 = vector.extract_strided_slice %5 {offsets = [2, 0, 0], sizes = [16, 16, 4], strides = [1, 1, 1]} : vector<18x18x4xf32> to vector<16x16x4xf32>
    %13 = vector.extract_strided_slice %5 {offsets = [2, 1, 0], sizes = [16, 16, 4], strides = [1, 1, 1]} : vector<18x18x4xf32> to vector<16x16x4xf32>
    %14 = vector.extract_strided_slice %5 {offsets = [2, 2, 0], sizes = [16, 16, 4], strides = [1, 1, 1]} : vector<18x18x4xf32> to vector<16x16x4xf32>
    %15 = tpu.concatenate %6, %7, %8, %9, %10, %11, %12, %13, %14 in 2 : vector<16x16x4xf32>, vector<16x16x4xf32>, vector<16x16x4xf32>, vector<16x16x4xf32>, vector<16x16x4xf32>, vector<16x16x4xf32>, vector<16x16x4xf32>, vector<16x16x4xf32>, vector<16x16x4xf32> -> vector<16x16x36xf32>
    %16 = vector.shape_cast %15 : vector<16x16x36xf32> to vector<256x36xf32>
    %17 = arith.truncf %16 : vector<256x36xf32> to vector<256x36xbf16>
    %c0_4 = arith.constant 0 : index
    %c0_5 = arith.constant 0 : index
    %18 = vector.load %arg2[%c0_4, %c0_5] : memref<36x128xbf16, #tpu.memory_space<vmem>>, vector<36x128xbf16>
    %cst_6 = arith.constant dense<0.000000e+00> : vector<256x128xf32>
    %19 = tpu.matmul %17, %18, %cst_6 {dimension_numbers = #tpu.dot_dimension_numbers<[1], [0], [0], [1], [0, 0, 1, 1], [], []>} : vector<256x36xbf16>, vector<36x128xbf16>, vector<256x128xf32> -> vector<256x128xf32>
    %20 = vector.shape_cast %19 : vector<256x128xf32> to vector<1x16x16x128xf32>
    %c0_7 = arith.constant 0 : index
    %c0_8 = arith.constant 0 : index
    %c0_9 = arith.constant 0 : index
    %c0_10 = arith.constant 0 : index
    %21 = vector.load %arg3[%c0_7, %c0_8, %c0_9, %c0_10] : memref<1x16x16x128xf32, #tpu.memory_space<vmem>>, vector<1x16x16x128xf32>
    tpu.vector_store %arg3[%c0_7, %c0_8, %c0_9, %c0_10], %20 {strides = array<i32>} : memref<1x16x16x128xf32, #tpu.memory_space<vmem>>, vector<1x16x16x128xf32>,
    %cst_11 = arith.constant dense<0.000000e+00> : vector<128xf32>
    %22 = vector.multi_reduction <add>, %19, %cst_11 [0] : vector<256x128xf32> to vector<128xf32>
    %23 = vector.shape_cast %22 : vector<128xf32> to vector<1x128xf32>
    %24 = arith.mulf %19, %19 : vector<256x128xf32>
    %cst_12 = arith.constant dense<0.000000e+00> : vector<128xf32>
    %25 = vector.multi_reduction <add>, %24, %cst_12 [0] : vector<256x128xf32> to vector<128xf32>
    %26 = vector.shape_cast %25 : vector<128xf32> to vector<1x128xf32>
    %cst_13 = arith.constant 0.000000e+00 : f32
    %27 = vector.broadcast %cst_13 : f32 to vector<6x128xf32>
    %28 = tpu.concatenate %23, %26, %27 in 0 : vector<1x128xf32>, vector<1x128xf32>, vector<6x128xf32> -> vector<8x128xf32>
    %29 = vector.shape_cast %28 : vector<8x128xf32> to vector<1x8x128xf32>
    %c0_14 = arith.constant 0 : index
    %c0_15 = arith.constant 0 : index
    %c0_16 = arith.constant 0 : index
    %30 = vector.load %arg4[%c0_14, %c0_15, %c0_16] : memref<1x8x128xf32, #tpu.memory_space<vmem>>, vector<1x8x128xf32>
    tpu.vector_store %arg4[%c0_14, %c0_15, %c0_16], %29 {strides = array<i32>} : memref<1x8x128xf32, #tpu.memory_space<vmem>>, vector<1x8x128xf32>,
    return
  }
  func.func @transform_0(%arg0: i32) -> (i32, i32, i32, i32) {
    %c0_i32 = arith.constant 0 : i32
    %c0_i32_0 = arith.constant 0 : i32
    %c0_i32_1 = arith.constant 0 : i32
    %c0_i32_2 = arith.constant 0 : i32
    return %arg0, %c0_i32, %c0_i32_0, %c0_i32_1 : i32, i32, i32, i32
  }
  func.func @transform_1(%arg0: i32) -> (i32, i32) {
    %c0_i32 = arith.constant 0 : i32
    %c0_i32_0 = arith.constant 0 : i32
    %c0_i32_1 = arith.constant 0 : i32
    return %c0_i32, %c0_i32_0 : i32, i32
  }
  func.func @transform_2(%arg0: i32) -> (i32, i32, i32, i32) {
    %c0_i32 = arith.constant 0 : i32
    %c0_i32_0 = arith.constant 0 : i32
    %c0_i32_1 = arith.constant 0 : i32
    %c0_i32_2 = arith.constant 0 : i32
    return %arg0, %c0_i32, %c0_i32_0, %c0_i32_1 : i32, i32, i32, i32
  }
  func.func @transform_3(%arg0: i32) -> (i32, i32, i32) {
    %c0_i32 = arith.constant 0 : i32
    %c0_i32_0 = arith.constant 0 : i32
    %c0_i32_1 = arith.constant 0 : i32
    return %arg0, %c0_i32, %c0_i32_0 : i32, i32, i32
  }
}

</mosaic_0001>

<llo_original>
// kernel: conv_block_forward.3
$region0: #{conv_block_forward.3}
  #allocation0 [shape = 'u32[]', space=smem, size = 0x4, offset = 0x4, fixed_abs, tag = 'smem constant byte address 0x4 - core index']
  #allocation1 [shape = 'u32[144,128]{1,0:T(1,128)}', space=vmem, size = 0x12000, scoped, tag = 'internal scratch']
  %s0 = inlined_call_operand.vmem [shape: f32[2,16,16,128], index: 0, kind: input, shape index: {}]
  %s1 = inlined_call_operand.vmem [shape: f32[1,128], index: 1, kind: input, shape index: {}]
  %s2 = inlined_call_operand.vmem [shape: f32[1,128], index: 2, kind: input, shape index: {}]
  %s3 = inlined_call_operand.vmem [shape: f32[2,16,16,128], index: 3, kind: output, shape index: {}]
  %s4 = sld [smem:[#allocation0]]
  $region45: #{conv_block_forward.3} parent=0
    _
  %s6 = ssub.s32 1, %s4
  %s7 = scalar_select 0, %s6, %s4
  loop: start=0, step=1, limit=4
  $region2: #{conv_block_forward.3} parent=0 // loop_pre_header
    _
  $region3: #{conv_block_forward.3} parent=0 // loop_header
    %s9 = sphi 0, %s13
    %p10 = scmp.ge.s32.totalorder %s9, 4
    %s19 = sphi 0, %s21
    %s22 = sphi 0, %s19
    %s23 = sphi 0, %s22
    %s39 = sphi 0, %s23
    %s43 = sphi 0, %s43
    %s45 = sphi 0, %s43
    %s46 = sphi 0, %s45
    %s60 = sphi 0, %s46
    %s64 = sphi 0, %s64
    %s66 = sphi 0, %s64
    %s67 = sphi 0, %s66
    %s81 = sphi 0, %s67
    %s87 = sphi 0, %s89
    %s90 = sphi 0, %s87
    %s91 = sphi 0, %s90
    %s107 = sphi 0, %s91
  $region4: #{conv_block_forward.3} parent=0 // loop_header_branch
    %12 = sbr.rel (%p10) target = $region8
  $region5: #{conv_block_forward.3} parent=0 // loop_body
    %s14 = ssub.s32 %s9, 1
    %s15 = ssub.s32 %s9, 2
    %s16 = sadd.s32 %s9, 1
    %s17 = ssub.s32 %s9, %s16
    %p18 = scmp.eq.s32.totalorder %s17, 0
    %s20 = sadd.s32 %s19, 1
    %s21 = scalar_select %p18, %s19, %s20
    %p24 = pneg %p18
    %p25 = scmp.eq.s32.totalorder %s9, 1
    %p26 = por %p24, %p25
    %p27 = scmp.ne.s32.totalorder %s19, %s22
    %p28 = scmp.eq.s32.totalorder %s9, 0
    %p29 = por %p27, %p28
    %p30 = scmp.ne.s32.totalorder %s19, %s22
    %p31 = scmp.eq.s32.totalorder %s14, 1
    %p32 = por %p30, %p31
    %p33 = scmp.ne.s32.totalorder %s22, %s23
    %p34 = scmp.eq.s32.totalorder %s14, 0
    %p35 = por %p33, %p34
    %p36 = scmp.ne.s32.totalorder %s22, %s23
    %p37 = scmp.eq.s32.totalorder %s15, 1
    %p38 = por %p36, %p37
    %p40 = scmp.ne.s32.totalorder %s23, %s39
    %p41 = scmp.eq.s32.totalorder %s15, 0
    %p42 = por %p40, %p41
    %s44 = sadd.s32 %s43, 1
    %p47 = scmp.eq.s32.totalorder %s9, 1
    %p48 = scmp.ne.s32.totalorder %s43, %s45
    %p49 = scmp.eq.s32.totalorder %s9, 0
    %p50 = por %p48, %p49
    %p51 = scmp.ne.s32.totalorder %s43, %s45
    %p52 = scmp.eq.s32.totalorder %s14, 1
    %p53 = por %p51, %p52
    %p54 = scmp.ne.s32.totalorder %s45, %s46
    %p55 = scmp.eq.s32.totalorder %s14, 0
    %p56 = por %p54, %p55
    %p57 = scmp.ne.s32.totalorder %s45, %s46
    %p58 = scmp.eq.s32.totalorder %s15, 1
    %p59 = por %p57, %p58
    %p61 = scmp.ne.s32.totalorder %s46, %s60
    %p62 = scmp.eq.s32.totalorder %s15, 0
    %p63 = por %p61, %p62
    %s65 = sadd.s32 %s64, 1
    %p68 = scmp.eq.s32.totalorder %s9, 1
    %p69 = scmp.ne.s32.totalorder %s64, %s66
    %p70 = scmp.eq.s32.totalorder %s9, 0
    %p71 = por %p69, %p70
    %p72 = scmp.ne.s32.totalorder %s64, %s66
    %p73 = scmp.eq.s32.totalorder %s14, 1
    %p74 = por %p72, %p73
    %p75 = scmp.ne.s32.totalorder %s66, %s67
    %p76 = scmp.eq.s32.totalorder %s14, 0
    %p77 = por %p75, %p76
    %p78 = scmp.ne.s32.totalorder %s66, %s67
    %p79 = scmp.eq.s32.totalorder %s15, 1
    %p80 = por %p78, %p79
    %p82 = scmp.ne.s32.totalorder %s67, %s81
    %p83 = scmp.eq.s32.totalorder %s15, 0
    %p84 = por %p82, %p83
    %s85 = ssub.s32 %s9, %s16
    %p86 = scmp.eq.s32.totalorder %s85, 0
    %s88 = sadd.s32 %s87, 1
    %s89 = scalar_select %p86, %s87, %s88
    %p92 = pneg %p86
    %p93 = scmp.eq.s32.totalorder %s9, 1
    %p94 = por %p92, %p93
    %p95 = scmp.ne.s32.totalorder %s87, %s90
    %p96 = scmp.eq.s32.totalorder %s9, 0
    %p97 = por %p95, %p96
    %p98 = scmp.ne.s32.totalorder %s87, %s90
    %p99 = scmp.eq.s32.totalorder %s14, 1
    %p100 = por %p98, %p99
    %p101 = scmp.ne.s32.totalorder %s90, %s91
    %p102 = scmp.eq.s32.totalorder %s14, 0
    %p103 = por %p101, %p102
    %p104 = scmp.ne.s32.totalorder %s90, %s91
    %p105 = scmp.eq.s32.totalorder %s15, 1
    %p106 = por %p104, %p105
    %p108 = scmp.ne.s32.totalorder %s91, %s107
    %p109 = scmp.eq.s32.totalorder %s15, 0
    %p110 = por %p108, %p109
    %p111 = scmp.le.s32.totalorder 1, %s9
    %p112 = scmp.lt.s32.totalorder %s9, 3
    %p113 = pnand %p111, %p112
    %p114 = pneg %p113
    // Predicated region
    $region9: #{conv_block_forward.3} parent=5 // pred_check
      _
    $region10: #{conv_block_forward.3} parent=5 // pred_check_branch
      %116 = sbr.rel (%p113) target = $region12
    $region11: #{conv_block_forward.3} parent=5 // pred_region
      %s117 = ssub.s32 %s9, 1
      // Predicated region
      $region13: #{conv_block_forward.3} parent=11 // pred_check
        %p118 = pneg %p56
      $region14: #{conv_block_forward.3} parent=11 // pred_check_branch
        %120 = sbr.rel (%p118) target = $region16
      $region15: #{conv_block_forward.3} parent=11 // pred_region
        _
      $region16: #{conv_block_forward.3} parent=11 // pred_fallthru
        _
      // Predicated region
      $region17: #{conv_block_forward.3} parent=11 // pred_check
        %p121 = pneg %p77
      $region18: #{conv_block_forward.3} parent=11 // pred_check_branch
        %123 = sbr.rel (%p121) target = $region20
      $region19: #{conv_block_forward.3} parent=11 // pred_region
        _
      $region20: #{conv_block_forward.3} parent=11 // pred_fallthru
        _
    $region12: #{conv_block_forward.3} parent=5 // pred_fallthru
      _
    %p124 = scmp.lt.s32.totalorder %s9, 2
    // Predicated region
    $region21: #{conv_block_forward.3} parent=5 // pred_check
      %p125 = pneg %p124
    $region22: #{conv_block_forward.3} parent=5 // pred_check_branch
      %127 = sbr.rel (%p125) target = $region24
    $region23: #{conv_block_forward.3} parent=5 // pred_region
      // Predicated region
      $region25: #{conv_block_forward.3} parent=23 // pred_check
        %p128 = pneg %p29
      $region26: #{conv_block_forward.3} parent=23 // pred_check_branch
        %130 = sbr.rel (%p128) target = $region28
      $region27: #{conv_block_forward.3} parent=23 // pred_region
        %p131 = scmp.lt.s32.totalorder %s9, 1
        %s132 = scalar_select %p131, %s9, 1
        %s133 = smul.addr %s132, 32
        %s134 = smul.addr %s133, 8
        %s135 = scalar_lea.vmem %s0, %s134
      $region28: #{conv_block_forward.3} parent=23 // pred_fallthru
        _
    $region24: #{conv_block_forward.3} parent=5 // pred_fallthru
      _
    %p136 = scmp.le.s32.totalorder 1, %s9
    %p137 = scmp.lt.s32.totalorder %s9, 3
    %p138 = pnand %p136, %p137
    %p139 = pneg %p138
    // Predicated region
    $region29: #{conv_block_forward.3} parent=5 // pred_check
      _
    $region30: #{conv_block_forward.3} parent=5 // pred_check_branch
      %141 = sbr.rel (%p138) target = $region32
    $region31: #{conv_block_forward.3} parent=5 // pred_region
      %s142 = ssub.s32 %s9, 1
      %p143 = scmp.lt.s32.totalorder %s14, 1
      %s144 = scalar_select %p143, %s14, 1
      %s145 = smul.addr %s144, 32
      %s146 = smul.addr %s145, 8
      %s147 = scalar_lea.vmem %s0, %s146
      %p148 = pneg %p35
      %p149 = pneg %p32
      %p150 = pneg %p56
      %p151 = pneg %p53
      %p152 = pneg %p77
      %p153 = pneg %p74
      %p154 = pneg %p103
      %p155 = pneg %p100
      %p156 = scmp.lt.s32.totalorder %s14, 1
      %s157 = scalar_select %p156, %s14, 1
      %s158 = smul.addr %s157, 32
      %s159 = smul.addr %s158, 8
      %s160 = scalar_lea.vmem %s3, %s159
      %p161 = scmp.lt.s32.totalorder %s14, 1
      %s162 = scalar_select %p161, %s14, 1
      %s163 = smul.addr %s162, 32
      %s164 = smul.addr %s163, 8
      %s165 = scalar_lea.vmem %s0, %s164
      %p166 = scmp.lt.s32.totalorder %s14, 1
      %s167 = scalar_select %p166, %s14, 1
      %s168 = smul.addr %s167, 32
      %s169 = smul.addr %s168, 8
      %s170 = scalar_lea.vmem %s3, %s169
      %v171 = vld [vmem:[%s1] sm:$0x1]
      %v172 = vld [vmem:[%s2] sm:$0x1]
      %v173 = vld [vmem:[%s165] sm:$0xff]
      %v174 = vld [vmem:[%s165 + $0x8] sm:$0xff]
      %v175 = vld [vmem:[%s165 + $0x10] sm:$0xff]
      %v176 = vld [vmem:[%s165 + $0x18] sm:$0xff]
      %v177 = vld [vmem:[%s165 + $0x20] sm:$0xff]
      %v178 = vld [vmem:[%s165 + $0x28] sm:$0xff]
      %v179 = vld [vmem:[%s165 + $0x30] sm:$0xff]
      %v180 = vld [vmem:[%s165 + $0x38] sm:$0xff]
      %v181 = vld [vmem:[%s165 + $0x40] sm:$0xff]
      %v182 = vld [vmem:[%s165 + $0x48] sm:$0xff]
      %v183 = vld [vmem:[%s165 + $0x50] sm:$0xff]
      %v184 = vld [vmem:[%s165 + $0x58] sm:$0xff]
      %v185 = vld [vmem:[%s165 + $0x60] sm:$0xff]
      %v186 = vld [vmem:[%s165 + $0x68] sm:$0xff]
      %v187 = vld [vmem:[%s165 + $0x70] sm:$0xff]
      %v188 = vld [vmem:[%s165 + $0x78] sm:$0xff]
      %v189 = vld [vmem:[%s165 + $0x80] sm:$0xff]
      %v190 = vld [vmem:[%s165 + $0x88] sm:$0xff]
      %v191 = vld [vmem:[%s165 + $0x90] sm:$0xff]
      %v192 = vld [vmem:[%s165 + $0x98] sm:$0xff]
      %v193 = vld [vmem:[%s165 + $0xa0] sm:$0xff]
      %v194 = vld [vmem:[%s165 + $0xa8] sm:$0xff]
      %v195 = vld [vmem:[%s165 + $0xb0] sm:$0xff]
      %v196 = vld [vmem:[%s165 + $0xb8] sm:$0xff]
      %v197 = vld [vmem:[%s165 + $0xc0] sm:$0xff]
      %v198 = vld [vmem:[%s165 + $0xc8] sm:$0xff]
      %v199 = vld [vmem:[%s165 + $0xd0] sm:$0xff]
      %v200 = vld [vmem:[%s165 + $0xd8] sm:$0xff]
      %v201 = vld [vmem:[%s165 + $0xe0] sm:$0xff]
      %v202 = vld [vmem:[%s165 + $0xe8] sm:$0xff]
      %v203 = vld [vmem:[%s165 + $0xf0] sm:$0xff]
      %v204 = vld [vmem:[%s165 + $0xf8] sm:$0xff]
      %v206 = vlaneseq
      %v207 = vshrl.u32 %v206, 7
      %v208 = vsub.s32 0, %v207
      %v209 = vrot.slane %v171, %v208
      %v211 = vmul.f32 %v173, %v209
      %v212 = vmul.f32 %v174, %v209
      %v213 = vmul.f32 %v175, %v209
      %v214 = vmul.f32 %v176, %v209
      %v215 = vmul.f32 %v177, %v209
      %v216 = vmul.f32 %v178, %v209
      %v217 = vmul.f32 %v179, %v209
      %v218 = vmul.f32 %v180, %v209
      %v219 = vmul.f32 %v181, %v209
      %v220 = vmul.f32 %v182, %v209
      %v221 = vmul.f32 %v183, %v209
      %v222 = vmul.f32 %v184, %v209
      %v223 = vmul.f32 %v185, %v209
      %v224 = vmul.f32 %v186, %v209
      %v225 = vmul.f32 %v187, %v209
      %v226 = vmul.f32 %v188, %v209
      %v227 = vmul.f32 %v189, %v209
      %v228 = vmul.f32 %v190, %v209
      %v229 = vmul.f32 %v191, %v209
      %v230 = vmul.f32 %v192, %v209
      %v231 = vmul.f32 %v193, %v209
      %v232 = vmul.f32 %v194, %v209
      %v233 = vmul.f32 %v195, %v209
      %v234 = vmul.f32 %v196, %v209
      %v235 = vmul.f32 %v197, %v209
      %v236 = vmul.f32 %v198, %v209
      %v237 = vmul.f32 %v199, %v209
      %v238 = vmul.f32 %v200, %v209
      %v239 = vmul.f32 %v201, %v209
      %v240 = vmul.f32 %v202, %v209
      %v241 = vmul.f32 %v203, %v209
      %v242 = vmul.f32 %v204, %v209
      %v244 = vlaneseq
      %v245 = vshrl.u32 %v244, 7
      %v246 = vsub.s32 0, %v245
      %v247 = vrot.slane %v172, %v246
      %v249 = vadd.f32 %v211, %v247
      %v250 = vadd.f32 %v212, %v247
      %v251 = vadd.f32 %v213, %v247
      %v252 = vadd.f32 %v214, %v247
      %v253 = vadd.f32 %v215, %v247
      %v254 = vadd.f32 %v216, %v247
      %v255 = vadd.f32 %v217, %v247
      %v256 = vadd.f32 %v218, %v247
      %v257 = vadd.f32 %v219, %v247
      %v258 = vadd.f32 %v220, %v247
      %v259 = vadd.f32 %v221, %v247
      %v260 = vadd.f32 %v222, %v247
      %v261 = vadd.f32 %v223, %v247
      %v262 = vadd.f32 %v224, %v247
      %v263 = vadd.f32 %v225, %v247
      %v264 = vadd.f32 %v226, %v247
      %v265 = vadd.f32 %v227, %v247
      %v266 = vadd.f32 %v228, %v247
      %v267 = vadd.f32 %v229, %v247
      %v268 = vadd.f32 %v230, %v247
      %v269 = vadd.f32 %v231, %v247
      %v270 = vadd.f32 %v232, %v247
      %v271 = vadd.f32 %v233, %v247
      %v272 = vadd.f32 %v234, %v247
      %v273 = vadd.f32 %v235, %v247
      %v274 = vadd.f32 %v236, %v247
      %v275 = vadd.f32 %v237, %v247
      %v276 = vadd.f32 %v238, %v247
      %v277 = vadd.f32 %v239, %v247
      %v278 = vadd.f32 %v240, %v247
      %v279 = vadd.f32 %v241, %v247
      %v280 = vadd.f32 %v242, %v247
      %v281 = vmax.f32 %v249, 0.0
      %v282 = vmax.f32 %v250, 0.0
      %v283 = vmax.f32 %v251, 0.0
      %v284 = vmax.f32 %v252, 0.0
      %v285 = vmax.f32 %v253, 0.0
      %v286 = vmax.f32 %v254, 0.0
      %v287 = vmax.f32 %v255, 0.0
      %v288 = vmax.f32 %v256, 0.0
      %v289 = vmax.f32 %v257, 0.0
      %v290 = vmax.f32 %v258, 0.0
      %v291 = vmax.f32 %v259, 0.0
      %v292 = vmax.f32 %v260, 0.0
      %v293 = vmax.f32 %v261, 0.0
      %v294 = vmax.f32 %v262, 0.0
      %v295 = vmax.f32 %v263, 0.0
      %v296 = vmax.f32 %v264, 0.0
      %v297 = vmax.f32 %v265, 0.0
      %v298 = vmax.f32 %v266, 0.0
      %v299 = vmax.f32 %v267, 0.0
      %v300 = vmax.f32 %v268, 0.0
      %v301 = vmax.f32 %v269, 0.0
      %v302 = vmax.f32 %v270, 0.0
      %v303 = vmax.f32 %v271, 0.0
      %v304 = vmax.f32 %v272, 0.0
      %v305 = vmax.f32 %v273, 0.0
      %v306 = vmax.f32 %v274, 0.0
      %v307 = vmax.f32 %v275, 0.0
      %v308 = vmax.f32 %v276, 0.0
      %v309 = vmax.f32 %v277, 0.0
      %v310 = vmax.f32 %v278, 0.0
      %v311 = vmax.f32 %v279, 0.0
      %v312 = vmax.f32 %v280, 0.0
      %313 = vst [vmem:[%s170] sm:$0xff] %v281
      %314 = vst [vmem:[%s170 + $0x8] sm:$0xff] %v282
      %315 = vst [vmem:[%s170 + $0x10] sm:$0xff] %v283
      %316 = vst [vmem:[%s170 + $0x18] sm:$0xff] %v284
      %317 = vst [vmem:[%s170 + $0x20] sm:$0xff] %v285
      %318 = vst [vmem:[%s170 + $0x28] sm:$0xff] %v286
      %319 = vst [vmem:[%s170 + $0x30] sm:$0xff] %v287
      %320 = vst [vmem:[%s170 + $0x38] sm:$0xff] %v288
      %321 = vst [vmem:[%s170 + $0x40] sm:$0xff] %v289
      %322 = vst [vmem:[%s170 + $0x48] sm:$0xff] %v290
      %323 = vst [vmem:[%s170 + $0x50] sm:$0xff] %v291
      %324 = vst [vmem:[%s170 + $0x58] sm:$0xff] %v292
      %325 = vst [vmem:[%s170 + $0x60] sm:$0xff] %v293
      %326 = vst [vmem:[%s170 + $0x68] sm:$0xff] %v294
      %327 = vst [vmem:[%s170 + $0x70] sm:$0xff] %v295
      %328 = vst [vmem:[%s170 + $0x78] sm:$0xff] %v296
      %329 = vst [vmem:[%s170 + $0x80] sm:$0xff] %v297
      %330 = vst [vmem:[%s170 + $0x88] sm:$0xff] %v298
      %331 = vst [vmem:[%s170 + $0x90] sm:$0xff] %v299
      %332 = vst [vmem:[%s170 + $0x98] sm:$0xff] %v300
      %333 = vst [vmem:[%s170 + $0xa0] sm:$0xff] %v301
      %334 = vst [vmem:[%s170 + $0xa8] sm:$0xff] %v302
      %335 = vst [vmem:[%s170 + $0xb0] sm:$0xff] %v303
      %336 = vst [vmem:[%s170 + $0xb8] sm:$0xff] %v304
      %337 = vst [vmem:[%s170 + $0xc0] sm:$0xff] %v305
      %338 = vst [vmem:[%s170 + $0xc8] sm:$0xff] %v306
      %339 = vst [vmem:[%s170 + $0xd0] sm:$0xff] %v307
      %340 = vst [vmem:[%s170 + $0xd8] sm:$0xff] %v308
      %341 = vst [vmem:[%s170 + $0xe0] sm:$0xff] %v309
      %342 = vst [vmem:[%s170 + $0xe8] sm:$0xff] %v310
      %343 = vst [vmem:[%s170 + $0xf0] sm:$0xff] %v311
      %344 = vst [vmem:[%s170 + $0xf8] sm:$0xff] %v312
      %p345 = scmp.lt.s32.totalorder %s14, 1
      %s346 = scalar_select %p345, %s14, 1
      %s347 = smul.addr %s346, 32
      %s348 = smul.addr %s347, 8
      %s349 = scalar_lea.vmem %s3, %s348
      // Predicated region
      $region33: #{conv_block_forward.3} parent=31 // pred_check
        %p350 = pneg %p100
      $region34: #{conv_block_forward.3} parent=31 // pred_check_branch
        %352 = sbr.rel (%p350) target = $region36
      $region35: #{conv_block_forward.3} parent=31 // pred_region
        _
      $region36: #{conv_block_forward.3} parent=31 // pred_fallthru
        _
    $region32: #{conv_block_forward.3} parent=5 // pred_fallthru
      _
    %p353 = scmp.le.s32.totalorder 2, %s9
    // Predicated region
    $region37: #{conv_block_forward.3} parent=5 // pred_check
      %p354 = pneg %p353
    $region38: #{conv_block_forward.3} parent=5 // pred_check_branch
      %356 = sbr.rel (%p354) target = $region40
    $region39: #{conv_block_forward.3} parent=5 // pred_region
      %s357 = ssub.s32 %s9, 2
      // Predicated region
      $region41: #{conv_block_forward.3} parent=39 // pred_check
        %p358 = pneg %p106
      $region42: #{conv_block_forward.3} parent=39 // pred_check_branch
        %360 = sbr.rel (%p358) target = $region44
      $region43: #{conv_block_forward.3} parent=39 // pred_region
        %p361 = scmp.lt.s32.totalorder %s15, 1
        %s362 = scalar_select %p361, %s15, 1
        %s363 = smul.addr %s362, 32
        %s364 = smul.addr %s363, 8
        %s365 = scalar_lea.vmem %s3, %s364
      $region44: #{conv_block_forward.3} parent=39 // pred_fallthru
        _
    $region40: #{conv_block_forward.3} parent=5 // pred_fallthru
      _
  $region6: #{conv_block_forward.3} parent=0 // loop_footer
    %s13 = sadd.s32 1, %s9
  $region7: #{conv_block_forward.3} parent=0 // loop_footer_branch
    %8 = sbr.rel target = $region3
  $region8: #{conv_block_forward.3} parent=0 // loop_exit
    _

// kernel: conv_block_forward.2
$region0: #{conv_block_forward.2}
  #allocation0 [shape = 'u32[]', space=smem, size = 0x4, offset = 0x4, fixed_abs, tag = 'smem constant byte address 0x4 - core index']
  #allocation1 [shape = 'u32[144,128]{1,0:T(1,128)}', space=vmem, size = 0x12000, scoped, tag = 'internal scratch']
  %s0 = inlined_call_operand.vmem [shape: f32[2,16,16,4], index: 0, kind: input, shape index: {}]
  %s1 = inlined_call_operand.vmem [shape: bf16[36,128], index: 1, kind: input, shape index: {}]
  %s2 = inlined_call_operand.vmem [shape: f32[2,16,16,128], index: 2, kind: output, shape index: {0}]
  %s3 = inlined_call_operand.vmem [shape: f32[2,8,128], index: 3, kind: output, shape index: {1}]
  %4 = xla_tuple %s2, %s3
  %s5 = sld [smem:[#allocation0]]
  $region49: #{conv_block_forward.2} parent=0
    _
  %s7 = ssub.s32 1, %s5
  %s8 = scalar_select 0, %s7, %s5
  loop: start=0, step=1, limit=4
  $region2: #{conv_block_forward.2} parent=0 // loop_pre_header
    _
  $region3: #{conv_block_forward.2} parent=0 // loop_header
    %s10 = sphi 0, %s14
    %p11 = scmp.ge.s32.totalorder %s10, 4
    %s20 = sphi 0, %s22
    %s23 = sphi 0, %s20
    %s24 = sphi 0, %s23
    %s40 = sphi 0, %s24
    %s44 = sphi 0, %s44
    %s46 = sphi 0, %s44
    %s47 = sphi 0, %s46
    %s61 = sphi 0, %s47
    %s67 = sphi 0, %s69
    %s70 = sphi 0, %s67
    %s71 = sphi 0, %s70
    %s87 = sphi 0, %s71
    %s93 = sphi 0, %s95
    %s96 = sphi 0, %s93
    %s97 = sphi 0, %s96
    %s113 = sphi 0, %s97
  $region4: #{conv_block_forward.2} parent=0 // loop_header_branch
    %13 = sbr.rel (%p11) target = $region8
  $region5: #{conv_block_forward.2} parent=0 // loop_body
    %s15 = ssub.s32 %s10, 1
    %s16 = ssub.s32 %s10, 2
    %s17 = sadd.s32 %s10, 1
    %s18 = ssub.s32 %s10, %s17
    %p19 = scmp.eq.s32.totalorder %s18, 0
    %s21 = sadd.s32 %s20, 1
    %s22 = scalar_select %p19, %s20, %s21
    %p25 = pneg %p19
    %p26 = scmp.eq.s32.totalorder %s10, 1
    %p27 = por %p25, %p26
    %p28 = scmp.ne.s32.totalorder %s20, %s23
    %p29 = scmp.eq.s32.totalorder %s10, 0
    %p30 = por %p28, %p29
    %p31 = scmp.ne.s32.totalorder %s20, %s23
    %p32 = scmp.eq.s32.totalorder %s15, 1
    %p33 = por %p31, %p32
    %p34 = scmp.ne.s32.totalorder %s23, %s24
    %p35 = scmp.eq.s32.totalorder %s15, 0
    %p36 = por %p34, %p35
    %p37 = scmp.ne.s32.totalorder %s23, %s24
    %p38 = scmp.eq.s32.totalorder %s16, 1
    %p39 = por %p37, %p38
    %p41 = scmp.ne.s32.totalorder %s24, %s40
    %p42 = scmp.eq.s32.totalorder %s16, 0
    %p43 = por %p41, %p42
    %s45 = sadd.s32 %s44, 1
    %p48 = scmp.eq.s32.totalorder %s10, 1
    %p49 = scmp.ne.s32.totalorder %s44, %s46
    %p50 = scmp.eq.s32.totalorder %s10, 0
    %p51 = por %p49, %p50
    %p52 = scmp.ne.s32.totalorder %s44, %s46
    %p53 = scmp.eq.s32.totalorder %s15, 1
    %p54 = por %p52, %p53
    %p55 = scmp.ne.s32.totalorder %s46, %s47
    %p56 = scmp.eq.s32.totalorder %s15, 0
    %p57 = por %p55, %p56
    %p58 = scmp.ne.s32.totalorder %s46, %s47
    %p59 = scmp.eq.s32.totalorder %s16, 1
    %p60 = por %p58, %p59
    %p62 = scmp.ne.s32.totalorder %s47, %s61
    %p63 = scmp.eq.s32.totalorder %s16, 0
    %p64 = por %p62, %p63
    %s65 = ssub.s32 %s10, %s17
    %p66 = scmp.eq.s32.totalorder %s65, 0
    %s68 = sadd.s32 %s67, 1
    %s69 = scalar_select %p66, %s67, %s68
    %p72 = pneg %p66
    %p73 = scmp.eq.s32.totalorder %s10, 1
    %p74 = por %p72, %p73
    %p75 = scmp.ne.s32.totalorder %s67, %s70
    %p76 = scmp.eq.s32.totalorder %s10, 0
    %p77 = por %p75, %p76
    %p78 = scmp.ne.s32.totalorder %s67, %s70
    %p79 = scmp.eq.s32.totalorder %s15, 1
    %p80 = por %p78, %p79
    %p81 = scmp.ne.s32.totalorder %s70, %s71
    %p82 = scmp.eq.s32.totalorder %s15, 0
    %p83 = por %p81, %p82
    %p84 = scmp.ne.s32.totalorder %s70, %s71
    %p85 = scmp.eq.s32.totalorder %s16, 1
    %p86 = por %p84, %p85
    %p88 = scmp.ne.s32.totalorder %s71, %s87
    %p89 = scmp.eq.s32.totalorder %s16, 0
    %p90 = por %p88, %p89
    %s91 = ssub.s32 %s10, %s17
    %p92 = scmp.eq.s32.totalorder %s91, 0
    %s94 = sadd.s32 %s93, 1
    %s95 = scalar_select %p92, %s93, %s94
    %p98 = pneg %p92
    %p99 = scmp.eq.s32.totalorder %s10, 1
    %p100 = por %p98, %p99
    %p101 = scmp.ne.s32.totalorder %s93, %s96
    %p102 = scmp.eq.s32.totalorder %s10, 0
    %p103 = por %p101, %p102
    %p104 = scmp.ne.s32.totalorder %s93, %s96
    %p105 = scmp.eq.s32.totalorder %s15, 1
    %p106 = por %p104, %p105
    %p107 = scmp.ne.s32.totalorder %s96, %s97
    %p108 = scmp.eq.s32.totalorder %s15, 0
    %p109 = por %p107, %p108
    %p110 = scmp.ne.s32.totalorder %s96, %s97
    %p111 = scmp.eq.s32.totalorder %s16, 1
    %p112 = por %p110, %p111
    %p114 = scmp.ne.s32.totalorder %s97, %s113
    %p115 = scmp.eq.s32.totalorder %s16, 0
    %p116 = por %p114, %p115
    %p117 = scmp.le.s32.totalorder 1, %s10
    %p118 = scmp.lt.s32.totalorder %s10, 3
    %p119 = pnand %p117, %p118
    %p120 = pneg %p119
    // Predicated region
    $region9: #{conv_block_forward.2} parent=5 // pred_check
      _
    $region10: #{conv_block_forward.2} parent=5 // pred_check_branch
      %122 = sbr.rel (%p119) target = $region12
    $region11: #{conv_block_forward.2} parent=5 // pred_region
      %s123 = ssub.s32 %s10, 1
      // Predicated region
      $region13: #{conv_block_forward.2} parent=11 // pred_check
        %p124 = pneg %p57
      $region14: #{conv_block_forward.2} parent=11 // pred_check_branch
        %126 = sbr.rel (%p124) target = $region16
      $region15: #{conv_block_forward.2} parent=11 // pred_region
        _
      $region16: #{conv_block_forward.2} parent=11 // pred_fallthru
        _
    $region12: #{conv_block_forward.2} parent=5 // pred_fallthru
      _
    %p127 = scmp.lt.s32.totalorder %s10, 2
    // Predicated region
    $region17: #{conv_block_forward.2} parent=5 // pred_check
      %p128 = pneg %p127
    $region18: #{conv_block_forward.2} parent=5 // pred_check_branch
      %130 = sbr.rel (%p128) target = $region20
    $region19: #{conv_block_forward.2} parent=5 // pred_region
      // Predicated region
      $region21: #{conv_block_forward.2} parent=19 // pred_check
        %p131 = pneg %p30
      $region22: #{conv_block_forward.2} parent=19 // pred_check_branch
        %133 = sbr.rel (%p131) target = $region24
      $region23: #{conv_block_forward.2} parent=19 // pred_region
        %p134 = scmp.lt.s32.totalorder %s10, 1
        %s135 = scalar_select %p134, %s10, 1
        %s136 = smul.addr %s135, 32
        %s137 = smul.addr %s136, 8
        %s138 = scalar_lea.vmem %s0, %s137
      $region24: #{conv_block_forward.2} parent=19 // pred_fallthru
        _
    $region20: #{conv_block_forward.2} parent=5 // pred_fallthru
      _
    %p139 = scmp.le.s32.totalorder 1, %s10
    %p140 = scmp.lt.s32.totalorder %s10, 3
    %p141 = pnand %p139, %p140
    %p142 = pneg %p141
    // Predicated region
    $region25: #{conv_block_forward.2} parent=5 // pred_check
      _
    $region26: #{conv_block_forward.2} parent=5 // pred_check_branch
      %144 = sbr.rel (%p141) target = $region28
    $region27: #{conv_block_forward.2} parent=5 // pred_region
      %s145 = ssub.s32 %s10, 1
      %p146 = scmp.lt.s32.totalorder %s15, 1
      %s147 = scalar_select %p146, %s15, 1
      %s148 = smul.addr %s147, 32
      %s149 = smul.addr %s148, 8
      %s150 = scalar_lea.vmem %s0, %s149
      %p151 = pneg %p36
      %p152 = pneg %p33
      %p153 = pneg %p57
      %p154 = pneg %p54
      %p155 = pneg %p83
      %p156 = pneg %p80
      %p157 = scmp.lt.s32.totalorder %s15, 1
      %s158 = scalar_select %p157, %s15, 1
      %s159 = smul.addr %s158, 32
      %s160 = smul.addr %s159, 8
      %s161 = scalar_lea.vmem %s2, %s160
      %p162 = pneg %p109
      %p163 = pneg %p106
      %p164 = scmp.lt.s32.totalorder %s15, 1
      %s165 = scalar_select %p164, %s15, 1
      %s166 = smul.addr %s165, 8
      %s167 = scalar_lea.vmem %s3, %s166
      %p168 = scmp.lt.s32.totalorder %s15, 1
      %s169 = scalar_select %p168, %s15, 1
      %s170 = smul.addr %s169, 32
      %s171 = smul.addr %s170, 8
      %s172 = scalar_lea.vmem %s0, %s171
      %p173 = scmp.lt.s32.totalorder %s15, 1
      %s174 = scalar_select %p173, %s15, 1
      %s175 = smul.addr %s174, 32
      %s176 = smul.addr %s175, 8
      %s177 = scalar_lea.vmem %s2, %s176
      %p178 = scmp.lt.s32.totalorder %s15, 1
      %s179 = scalar_select %p178, %s15, 1
      %s180 = smul.addr %s179, 8
      %s181 = scalar_lea.vmem %s3, %s180
      %v183 = vld [vmem:[%s172] sm:$0xff]
      %v184 = vld [vmem:[%s172 + $0x8] sm:$0xff]
      %v185 = vld [vmem:[%s172 + $0x10] sm:$0xff]
      %v186 = vld [vmem:[%s172 + $0x18] sm:$0xff]
      %v187 = vld [vmem:[%s172 + $0x20] sm:$0xff]
      %v188 = vld [vmem:[%s172 + $0x28] sm:$0xff]
      %v189 = vld [vmem:[%s172 + $0x30] sm:$0xff]
      %v190 = vld [vmem:[%s172 + $0x38] sm:$0xff]
      %v191 = vld [vmem:[%s172 + $0x40] sm:$0xff]
      %v192 = vld [vmem:[%s172 + $0x48] sm:$0xff]
      %v193 = vld [vmem:[%s172 + $0x50] sm:$0xff]
      %v194 = vld [vmem:[%s172 + $0x58] sm:$0xff]
      %v195 = vld [vmem:[%s172 + $0x60] sm:$0xff]
      %v196 = vld [vmem:[%s172 + $0x68] sm:$0xff]
      %v197 = vld [vmem:[%s172 + $0x70] sm:$0xff]
      %v198 = vld [vmem:[%s172 + $0x78] sm:$0xff]
      %v199 = vld [vmem:[%s172 + $0x80] sm:$0xff]
      %v200 = vld [vmem:[%s172 + $0x88] sm:$0xff]
      %v201 = vld [vmem:[%s172 + $0x90] sm:$0xff]
      %v202 = vld [vmem:[%s172 + $0x98] sm:$0xff]
      %v203 = vld [vmem:[%s172 + $0xa0] sm:$0xff]
      %v204 = vld [vmem:[%s172 + $0xa8] sm:$0xff]
      %v205 = vld [vmem:[%s172 + $0xb0] sm:$0xff]
      %v206 = vld [vmem:[%s172 + $0xb8] sm:$0xff]
      %v207 = vld [vmem:[%s172 + $0xc0] sm:$0xff]
      %v208 = vld [vmem:[%s172 + $0xc8] sm:$0xff]
      %v209 = vld [vmem:[%s172 + $0xd0] sm:$0xff]
      %v210 = vld [vmem:[%s172 + $0xd8] sm:$0xff]
      %v211 = vld [vmem:[%s172 + $0xe0] sm:$0xff]
      %v212 = vld [vmem:[%s172 + $0xe8] sm:$0xff]
      %v213 = vld [vmem:[%s172 + $0xf0] sm:$0xff]
      %v214 = vld [vmem:[%s172 + $0xf8] sm:$0xff]
      %vm248 = vcmask 1040384
      %v249 = vrot.slane 0.0, 7
      %v250 = vsel %vm248, %v249, %v249
      %v251 = vrot.slane %v183, 7
      %v252 = vrot.slane %v184, 7
      %v253 = vsel %vm248, %v251, %v252
      %v254 = vrot.slane %v185, 7
      %v255 = vrot.slane %v186, 7
      %v256 = vsel %vm248, %v254, %v255
      %v257 = vrot.slane %v187, 7
      %v258 = vrot.slane %v188, 7
      %v259 = vsel %vm248, %v257, %v258
      %v260 = vrot.slane %v189, 7
      %v261 = vrot.slane %v190, 7
      %v262 = vsel %vm248, %v260, %v261
      %v263 = vrot.slane %v191, 7
      %v264 = vrot.slane %v192, 7
      %v265 = vsel %vm248, %v263, %v264
      %v266 = vrot.slane %v193, 7
      %v267 = vrot.slane %v194, 7
      %v268 = vsel %vm248, %v266, %v267
      %v269 = vrot.slane %v195, 7
      %v270 = vrot.slane %v196, 7
      %v271 = vsel %vm248, %v269, %v270
      %v272 = vrot.slane %v197, 7
      %v273 = vrot.slane %v198, 7
      %v274 = vsel %vm248, %v272, %v273
      %v275 = vrot.slane %v199, 7
      %v276 = vrot.slane %v200, 7
      %v277 = vsel %vm248, %v275, %v276
      %v278 = vrot.slane %v201, 7
      %v279 = vrot.slane %v202, 7
      %v280 = vsel %vm248, %v278, %v279
      %v281 = vrot.slane %v203, 7
      %v282 = vrot.slane %v204, 7
      %v283 = vsel %vm248, %v281, %v282
      %v284 = vrot.slane %v205, 7
      %v285 = vrot.slane %v206, 7
      %v286 = vsel %vm248, %v284, %v285
      %v287 = vrot.slane %v207, 7
      %v288 = vrot.slane %v208, 7
      %v289 = vsel %vm248, %v287, %v288
      %v290 = vrot.slane %v209, 7
      %v291 = vrot.slane %v210, 7
      %v292 = vsel %vm248, %v290, %v291
      %v293 = vrot.slane %v211, 7
      %v294 = vrot.slane %v212, 7
      %v295 = vsel %vm248, %v293, %v294
      %v296 = vrot.slane %v213, 7
      %v297 = vrot.slane %v214, 7
      %v298 = vsel %vm248, %v296, %v297
      %v348 = vsel %vm248, 0.0, %v249
      %v349 = vsel %vm248, 0.0, %v251
      %v350 = vsel %vm248, 0.0, %v254
      %v351 = vsel %vm248, 0.0, %v257
      %v352 = vsel %vm248, 0.0, %v260
      %v353 = vsel %vm248, 0.0, %v263
      %v354 = vsel %vm248, 0.0, %v266
      %v355 = vsel %vm248, 0.0, %v269
      %v356 = vsel %vm248, 0.0, %v272
      %v357 = vsel %vm248, 0.0, %v275
      %v358 = vsel %vm248, 0.0, %v278
      %v359 = vsel %vm248, 0.0, %v281
      %v360 = vsel %vm248, 0.0, %v284
      %v361 = vsel %vm248, 0.0, %v287
      %v362 = vsel %vm248, 0.0, %v290
      %v363 = vsel %vm248, 0.0, %v293
      %v364 = vsel %vm248, 0.0, %v296
      %v365 = vsel %vm248, %v249, 0.0
      %v366 = vsel %vm248, %v252, 0.0
      %v367 = vsel %vm248, %v255, 0.0
      %v368 = vsel %vm248, %v258, 0.0
      %v369 = vsel %vm248, %v261, 0.0
      %v370 = vsel %vm248, %v264, 0.0
      %v371 = vsel %vm248, %v267, 0.0
      %v372 = vsel %vm248, %v270, 0.0
      %v373 = vsel %vm248, %v273, 0.0
      %v374 = vsel %vm248, %v276, 0.0
      %v375 = vsel %vm248, %v279, 0.0
      %v376 = vsel %vm248, %v282, 0.0
      %v377 = vsel %vm248, %v285, 0.0
      %v378 = vsel %vm248, %v288, 0.0
      %v379 = vsel %vm248, %v291, 0.0
      %v380 = vsel %vm248, %v294, 0.0
      %v381 = vsel %vm248, %v297, 0.0
      %vm414 = vcmask 1046528
      %v415 = vrot.slane %v348, 1
      %v416 = vrot.slane %v250, 1
      %v417 = vsel %vm414, %v415, %v416
      %v418 = vrot.slane %v365, 1
      %v419 = vsel %vm414, %v416, %v418
      %v420 = vrot.slane %v349, 1
      %v421 = vrot.slane %v253, 1
      %v422 = vsel %vm414, %v420, %v421
      %v423 = vrot.slane %v366, 1
      %v424 = vsel %vm414, %v421, %v423
      %v425 = vrot.slane %v350, 1
      %v426 = vrot.slane %v256, 1
      %v427 = vsel %vm414, %v425, %v426
      %v428 = vrot.slane %v367, 1
      %v429 = vsel %vm414, %v426, %v428
      %v430 = vrot.slane %v351, 1
      %v431 = vrot.slane %v259, 1
      %v432 = vsel %vm414, %v430, %v431
      %v433 = vrot.slane %v368, 1
      %v434 = vsel %vm414, %v431, %v433
      %v435 = vrot.slane %v352, 1
      %v436 = vrot.slane %v262, 1
      %v437 = vsel %vm414, %v435, %v436
      %v438 = vrot.slane %v369, 1
      %v439 = vsel %vm414, %v436, %v438
      %v440 = vrot.slane %v353, 1
      %v441 = vrot.slane %v265, 1
      %v442 = vsel %vm414, %v440, %v441
      %v443 = vrot.slane %v370, 1
      %v444 = vsel %vm414, %v441, %v443
      %v445 = vrot.slane %v354, 1
      %v446 = vrot.slane %v268, 1
      %v447 = vsel %vm414, %v445, %v446
      %v448 = vrot.slane %v371, 1
      %v449 = vsel %vm414, %v446, %v448
      %v450 = vrot.slane %v355, 1
      %v451 = vrot.slane %v271, 1
      %v452 = vsel %vm414, %v450, %v451
      %v453 = vrot.slane %v372, 1
      %v454 = vsel %vm414, %v451, %v453
      %v455 = vrot.slane %v356, 1
      %v456 = vrot.slane %v274, 1
      %v457 = vsel %vm414, %v455, %v456
      %v458 = vrot.slane %v373, 1
      %v459 = vsel %vm414, %v456, %v458
      %v460 = vrot.slane %v357, 1
      %v461 = vrot.slane %v277, 1
      %v462 = vsel %vm414, %v460, %v461
      %v463 = vrot.slane %v374, 1
      %v464 = vsel %vm414, %v461, %v463
      %v465 = vrot.slane %v358, 1
      %v466 = vrot.slane %v280, 1
      %v467 = vsel %vm414, %v465, %v466
      %v468 = vrot.slane %v375, 1
      %v469 = vsel %vm414, %v466, %v468
      %v470 = vrot.slane %v359, 1
      %v471 = vrot.slane %v283, 1
      %v472 = vsel %vm414, %v470, %v471
      %v473 = vrot.slane %v376, 1
      %v474 = vsel %vm414, %v471, %v473
      %v475 = vrot.slane %v360, 1
      %v476 = vrot.slane %v286, 1
      %v477 = vsel %vm414, %v475, %v476
      %v478 = vrot.slane %v377, 1
      %v479 = vsel %vm414, %v476, %v478
      %v480 = vrot.slane %v361, 1
      %v481 = vrot.slane %v289, 1
      %v482 = vsel %vm414, %v480, %v481
      %v483 = vrot.slane %v378, 1
      %v484 = vsel %vm414, %v481, %v483
      %v485 = vrot.slane %v362, 1
      %v486 = vrot.slane %v292, 1
      %v487 = vsel %vm414, %v485, %v486
      %v488 = vrot.slane %v379, 1
      %v489 = vsel %vm414, %v486, %v488
      %v490 = vrot.slane %v363, 1
      %v491 = vrot.slane %v295, 1
      %v492 = vsel %vm414, %v490, %v491
      %v493 = vrot.slane %v380, 1
      %v494 = vsel %vm414, %v491, %v493
      %495 = vrot.lane.b32.xlu0 %v417, 4
      %v496 = vpop.permute.xlu0 %495
      %497 = vrot.lane.b32.xlu0 %v419, 4
      %v498 = vpop.permute.xlu0 %497
      %499 = vrot.lane.b32.xlu0 %v422, 4
      %v500 = vpop.permute.xlu0 %499
      %501 = vrot.lane.b32.xlu0 %v424, 4
      %v502 = vpop.permute.xlu0 %501
      %503 = vrot.lane.b32.xlu0 %v427, 4
      %v504 = vpop.permute.xlu0 %503
      %505 = vrot.lane.b32.xlu0 %v429, 4
      %v506 = vpop.permute.xlu0 %505
      %507 = vrot.lane.b32.xlu0 %v432, 4
      %v508 = vpop.permute.xlu0 %507
      %509 = vrot.lane.b32.xlu0 %v434, 4
      %v510 = vpop.permute.xlu0 %509
      %511 = vrot.lane.b32.xlu0 %v437, 4
      %v512 = vpop.permute.xlu0 %511
      %513 = vrot.lane.b32.xlu0 %v439, 4
      %v514 = vpop.permute.xlu0 %513
      %515 = vrot.lane.b32.xlu0 %v442, 4
      %v516 = vpop.permute.xlu0 %515
      %517 = vrot.lane.b32.xlu0 %v444, 4
      %v518 = vpop.permute.xlu0 %517
      %519 = vrot.lane.b32.xlu0 %v447, 4
      %v520 = vpop.permute.xlu0 %519
      %521 = vrot.lane.b32.xlu0 %v449, 4
      %v522 = vpop.permute.xlu0 %521
      %523 = vrot.lane.b32.xlu0 %v452, 4
      %v524 = vpop.permute.xlu0 %523
      %525 = vrot.lane.b32.xlu0 %v454, 4
      %v526 = vpop.permute.xlu0 %525
      %527 = vrot.lane.b32.xlu0 %v457, 4
      %v528 = vpop.permute.xlu0 %527
      %529 = vrot.lane.b32.xlu0 %v459, 4
      %v530 = vpop.permute.xlu0 %529
      %531 = vrot.lane.b32.xlu0 %v462, 4
      %v532 = vpop.permute.xlu0 %531
      %533 = vrot.lane.b32.xlu0 %v464, 4
      %v534 = vpop.permute.xlu0 %533
      %535 = vrot.lane.b32.xlu0 %v467, 4
      %v536 = vpop.permute.xlu0 %535
      %537 = vrot.lane.b32.xlu0 %v469, 4
      %v538 = vpop.permute.xlu0 %537
      %539 = vrot.lane.b32.xlu0 %v472, 4
      %v540 = vpop.permute.xlu0 %539
      %541 = vrot.lane.b32.xlu0 %v474, 4
      %v542 = vpop.permute.xlu0 %541
      %543 = vrot.lane.b32.xlu0 %v477, 4
      %v544 = vpop.permute.xlu0 %543
      %545 = vrot.lane.b32.xlu0 %v479, 4
      %v546 = vpop.permute.xlu0 %545
      %547 = vrot.lane.b32.xlu0 %v482, 4
      %v548 = vpop.permute.xlu0 %547
      %549 = vrot.lane.b32.xlu0 %v484, 4
      %v550 = vpop.permute.xlu0 %549
      %551 = vrot.lane.b32.xlu0 %v487, 4
      %v552 = vpop.permute.xlu0 %551
      %553 = vrot.lane.b32.xlu0 %v489, 4
      %v554 = vpop.permute.xlu0 %553
      %555 = vrot.lane.b32.xlu0 %v492, 4
      %v556 = vpop.permute.xlu0 %555
      %557 = vrot.lane.b32.xlu0 %v494, 4
      %v558 = vpop.permute.xlu0 %557
      %vm591 = vcmask 1045504
      %v592 = vrot.slane %v348, 2
      %v593 = vrot.slane %v250, 2
      %v594 = vsel %vm591, %v592, %v593
      %v595 = vrot.slane %v365, 2
      %v596 = vsel %vm591, %v593, %v595
      %v597 = vrot.slane %v349, 2
      %v598 = vrot.slane %v253, 2
      %v599 = vsel %vm591, %v597, %v598
      %v600 = vrot.slane %v366, 2
      %v601 = vsel %vm591, %v598, %v600
      %v602 = vrot.slane %v350, 2
      %v603 = vrot.slane %v256, 2
      %v604 = vsel %vm591, %v602, %v603
      %v605 = vrot.slane %v367, 2
      %v606 = vsel %vm591, %v603, %v605
      %v607 = vrot.slane %v351, 2
      %v608 = vrot.slane %v259, 2
      %v609 = vsel %vm591, %v607, %v608
      %v610 = vrot.slane %v368, 2
      %v611 = vsel %vm591, %v608, %v610
      %v612 = vrot.slane %v352, 2
      %v613 = vrot.slane %v262, 2
      %v614 = vsel %vm591, %v612, %v613
      %v615 = vrot.slane %v369, 2
      %v616 = vsel %vm591, %v613, %v615
      %v617 = vrot.slane %v353, 2
      %v618 = vrot.slane %v265, 2
      %v619 = vsel %vm591, %v617, %v618
      %v620 = vrot.slane %v370, 2
      %v621 = vsel %vm591, %v618, %v620
      %v622 = vrot.slane %v354, 2
      %v623 = vrot.slane %v268, 2
      %v624 = vsel %vm591, %v622, %v623
      %v625 = vrot.slane %v371, 2
      %v626 = vsel %vm591, %v623, %v625
      %v627 = vrot.slane %v355, 2
      %v628 = vrot.slane %v271, 2
      %v629 = vsel %vm591, %v627, %v628
      %v630 = vrot.slane %v372, 2
      %v631 = vsel %vm591, %v628, %v630
      %v632 = vrot.slane %v356, 2
      %v633 = vrot.slane %v274, 2
      %v634 = vsel %vm591, %v632, %v633
      %v635 = vrot.slane %v373, 2
      %v636 = vsel %vm591, %v633, %v635
      %v637 = vrot.slane %v357, 2
      %v638 = vrot.slane %v277, 2
      %v639 = vsel %vm591, %v637, %v638
      %v640 = vrot.slane %v374, 2
      %v641 = vsel %vm591, %v638, %v640
      %v642 = vrot.slane %v358, 2
      %v643 = vrot.slane %v280, 2
      %v644 = vsel %vm591, %v642, %v643
      %v645 = vrot.slane %v375, 2
      %v646 = vsel %vm591, %v643, %v645
      %v647 = vrot.slane %v359, 2
      %v648 = vrot.slane %v283, 2
      %v649 = vsel %vm591, %v647, %v648
      %v650 = vrot.slane %v376, 2
      %v651 = vsel %vm591, %v648, %v650
      %v652 = vrot.slane %v360, 2
      %v653 = vrot.slane %v286, 2
      %v654 = vsel %vm591, %v652, %v653
      %v655 = vrot.slane %v377, 2
      %v656 = vsel %vm591, %v653, %v655
      %v657 = vrot.slane %v361, 2
      %v658 = vrot.slane %v289, 2
      %v659 = vsel %vm591, %v657, %v658
      %v660 = vrot.slane %v378, 2
      %v661 = vsel %vm591, %v658, %v660
      %v662 = vrot.slane %v362, 2
      %v663 = vrot.slane %v292, 2
      %v664 = vsel %vm591, %v662, %v663
      %v665 = vrot.slane %v379, 2
      %v666 = vsel %vm591, %v663, %v665
      %v667 = vrot.slane %v363, 2
      %v668 = vrot.slane %v295, 2
      %v669 = vsel %vm591, %v667, %v668
      %v670 = vrot.slane %v380, 2
      %v671 = vsel %vm591, %v668, %v670
      %672 = vrot.lane.b32.xlu0 %v594, 8
      %v673 = vpop.permute.xlu0 %672
      %674 = vrot.lane.b32.xlu0 %v596, 8
      %v675 = vpop.permute.xlu0 %674
      %676 = vrot.lane.b32.xlu0 %v599, 8
      %v677 = vpop.permute.xlu0 %676
      %678 = vrot.lane.b32.xlu0 %v601, 8
      %v679 = vpop.permute.xlu0 %678
      %680 = vrot.lane.b32.xlu0 %v604, 8
      %v681 = vpop.permute.xlu0 %680
      %682 = vrot.lane.b32.xlu0 %v606, 8
      %v683 = vpop.permute.xlu0 %682
      %684 = vrot.lane.b32.xlu0 %v609, 8
      %v685 = vpop.permute.xlu0 %684
      %686 = vrot.lane.b32.xlu0 %v611, 8
      %v687 = vpop.permute.xlu0 %686
      %688 = vrot.lane.b32.xlu0 %v614, 8
      %v689 = vpop.permute.xlu0 %688
      %690 = vrot.lane.b32.xlu0 %v616, 8
      %v691 = vpop.permute.xlu0 %690
      %692 = vrot.lane.b32.xlu0 %v619, 8
      %v693 = vpop.permute.xlu0 %692
      %694 = vrot.lane.b32.xlu0 %v621, 8
      %v695 = vpop.permute.xlu0 %694
      %696 = vrot.lane.b32.xlu0 %v624, 8
      %v697 = vpop.permute.xlu0 %696
      %698 = vrot.lane.b32.xlu0 %v626, 8
      %v699 = vpop.permute.xlu0 %698
      %700 = vrot.lane.b32.xlu0 %v629, 8
      %v701 = vpop.permute.xlu0 %700
      %702 = vrot.lane.b32.xlu0 %v631, 8
      %v703 = vpop.permute.xlu0 %702
      %704 = vrot.lane.b32.xlu0 %v634, 8
      %v705 = vpop.permute.xlu0 %704
      %706 = vrot.lane.b32.xlu0 %v636, 8
      %v707 = vpop.permute.xlu0 %706
      %708 = vrot.lane.b32.xlu0 %v639, 8
      %v709 = vpop.permute.xlu0 %708
      %710 = vrot.lane.b32.xlu0 %v641, 8
      %v711 = vpop.permute.xlu0 %710
      %712 = vrot.lane.b32.xlu0 %v644, 8
      %v713 = vpop.permute.xlu0 %712
      %714 = vrot.lane.b32.xlu0 %v646, 8
      %v715 = vpop.permute.xlu0 %714
      %716 = vrot.lane.b32.xlu0 %v649, 8
      %v717 = vpop.permute.xlu0 %716
      %718 = vrot.lane.b32.xlu0 %v651, 8
      %v719 = vpop.permute.xlu0 %718
      %720 = vrot.lane.b32.xlu0 %v654, 8
      %v721 = vpop.permute.xlu0 %720
      %722 = vrot.lane.b32.xlu0 %v656, 8
      %v723 = vpop.permute.xlu0 %722
      %724 = vrot.lane.b32.xlu0 %v659, 8
      %v725 = vpop.permute.xlu0 %724
      %726 = vrot.lane.b32.xlu0 %v661, 8
      %v727 = vpop.permute.xlu0 %726
      %728 = vrot.lane.b32.xlu0 %v664, 8
      %v729 = vpop.permute.xlu0 %728
      %730 = vrot.lane.b32.xlu0 %v666, 8
      %v731 = vpop.permute.xlu0 %730
      %732 = vrot.lane.b32.xlu0 %v669, 8
      %v733 = vpop.permute.xlu0 %732
      %734 = vrot.lane.b32.xlu0 %v671, 8
      %v735 = vpop.permute.xlu0 %734
      %769 = vrot.lane.b32.xlu0 %v349, 12
      %v770 = vpop.permute.xlu0 %769
      %771 = vrot.lane.b32.xlu0 %v253, 12
      %v772 = vpop.permute.xlu0 %771
      %773 = vrot.lane.b32.xlu0 %v350, 12
      %v774 = vpop.permute.xlu0 %773
      %775 = vrot.lane.b32.xlu0 %v256, 12
      %v776 = vpop.permute.xlu0 %775
      %777 = vrot.lane.b32.xlu0 %v351, 12
      %v778 = vpop.permute.xlu0 %777
      %779 = vrot.lane.b32.xlu0 %v259, 12
      %v780 = vpop.permute.xlu0 %779
      %781 = vrot.lane.b32.xlu0 %v352, 12
      %v782 = vpop.permute.xlu0 %781
      %783 = vrot.lane.b32.xlu0 %v262, 12
      %v784 = vpop.permute.xlu0 %783
      %785 = vrot.lane.b32.xlu0 %v353, 12
      %v786 = vpop.permute.xlu0 %785
      %787 = vrot.lane.b32.xlu0 %v265, 12
      %v788 = vpop.permute.xlu0 %787
      %789 = vrot.lane.b32.xlu0 %v354, 12
      %v790 = vpop.permute.xlu0 %789
      %791 = vrot.lane.b32.xlu0 %v268, 12
      %v792 = vpop.permute.xlu0 %791
      %793 = vrot.lane.b32.xlu0 %v355, 12
      %v794 = vpop.permute.xlu0 %793
      %795 = vrot.lane.b32.xlu0 %v271, 12
      %v796 = vpop.permute.xlu0 %795
      %797 = vrot.lane.b32.xlu0 %v356, 12
      %v798 = vpop.permute.xlu0 %797
      %799 = vrot.lane.b32.xlu0 %v274, 12
      %v800 = vpop.permute.xlu0 %799
      %801 = vrot.lane.b32.xlu0 %v357, 12
      %v802 = vpop.permute.xlu0 %801
      %803 = vrot.lane.b32.xlu0 %v277, 12
      %v804 = vpop.permute.xlu0 %803
      %805 = vrot.lane.b32.xlu0 %v358, 12
      %v806 = vpop.permute.xlu0 %805
      %807 = vrot.lane.b32.xlu0 %v280, 12
      %v808 = vpop.permute.xlu0 %807
      %809 = vrot.lane.b32.xlu0 %v359, 12
      %v810 = vpop.permute.xlu0 %809
      %811 = vrot.lane.b32.xlu0 %v283, 12
      %v812 = vpop.permute.xlu0 %811
      %813 = vrot.lane.b32.xlu0 %v360, 12
      %v814 = vpop.permute.xlu0 %813
      %815 = vrot.lane.b32.xlu0 %v286, 12
      %v816 = vpop.permute.xlu0 %815
      %817 = vrot.lane.b32.xlu0 %v361, 12
      %v818 = vpop.permute.xlu0 %817
      %819 = vrot.lane.b32.xlu0 %v289, 12
      %v820 = vpop.permute.xlu0 %819
      %821 = vrot.lane.b32.xlu0 %v362, 12
      %v822 = vpop.permute.xlu0 %821
      %823 = vrot.lane.b32.xlu0 %v292, 12
      %v824 = vpop.permute.xlu0 %823
      %825 = vrot.lane.b32.xlu0 %v363, 12
      %v826 = vpop.permute.xlu0 %825
      %827 = vrot.lane.b32.xlu0 %v295, 12
      %v828 = vpop.permute.xlu0 %827
      %829 = vrot.lane.b32.xlu0 %v364, 12
      %v830 = vpop.permute.xlu0 %829
      %831 = vrot.lane.b32.xlu0 %v298, 12
      %v832 = vpop.permute.xlu0 %831
      %v866 = vrot.slane %v364, 1
      %v867 = vrot.slane %v298, 1
      %v868 = vsel %vm414, %v866, %v867
      %v869 = vrot.slane %v381, 1
      %v870 = vsel %vm414, %v867, %v869
      %871 = vrot.lane.b32.xlu0 %v422, 16
      %v872 = vpop.permute.xlu0 %871
      %873 = vrot.lane.b32.xlu0 %v424, 16
      %v874 = vpop.permute.xlu0 %873
      %875 = vrot.lane.b32.xlu0 %v427, 16
      %v876 = vpop.permute.xlu0 %875
      %877 = vrot.lane.b32.xlu0 %v429, 16
      %v878 = vpop.permute.xlu0 %877
      %879 = vrot.lane.b32.xlu0 %v432, 16
      %v880 = vpop.permute.xlu0 %879
      %881 = vrot.lane.b32.xlu0 %v434, 16
      %v882 = vpop.permute.xlu0 %881
      %883 = vrot.lane.b32.xlu0 %v437, 16
      %v884 = vpop.permute.xlu0 %883
      %885 = vrot.lane.b32.xlu0 %v439, 16
      %v886 = vpop.permute.xlu0 %885
      %887 = vrot.lane.b32.xlu0 %v442, 16
      %v888 = vpop.permute.xlu0 %887
      %889 = vrot.lane.b32.xlu0 %v444, 16
      %v890 = vpop.permute.xlu0 %889
      %891 = vrot.lane.b32.xlu0 %v447, 16
      %v892 = vpop.permute.xlu0 %891
      %893 = vrot.lane.b32.xlu0 %v449, 16
      %v894 = vpop.permute.xlu0 %893
      %895 = vrot.lane.b32.xlu0 %v452, 16
      %v896 = vpop.permute.xlu0 %895
      %897 = vrot.lane.b32.xlu0 %v454, 16
      %v898 = vpop.permute.xlu0 %897
      %899 = vrot.lane.b32.xlu0 %v457, 16
      %v900 = vpop.permute.xlu0 %899
      %901 = vrot.lane.b32.xlu0 %v459, 16
      %v902 = vpop.permute.xlu0 %901
      %903 = vrot.lane.b32.xlu0 %v462, 16
      %v904 = vpop.permute.xlu0 %903
      %905 = vrot.lane.b32.xlu0 %v464, 16
      %v906 = vpop.permute.xlu0 %905
      %907 = vrot.lane.b32.xlu0 %v467, 16
      %v908 = vpop.permute.xlu0 %907
      %909 = vrot.lane.b32.xlu0 %v469, 16
      %v910 = vpop.permute.xlu0 %909
      %911 = vrot.lane.b32.xlu0 %v472, 16
      %v912 = vpop.permute.xlu0 %911
      %913 = vrot.lane.b32.xlu0 %v474, 16
      %v914 = vpop.permute.xlu0 %913
      %915 = vrot.lane.b32.xlu0 %v477, 16
      %v916 = vpop.permute.xlu0 %915
      %917 = vrot.lane.b32.xlu0 %v479, 16
      %v918 = vpop.permute.xlu0 %917
      %919 = vrot.lane.b32.xlu0 %v482, 16
      %v920 = vpop.permute.xlu0 %919
      %921 = vrot.lane.b32.xlu0 %v484, 16
      %v922 = vpop.permute.xlu0 %921
      %923 = vrot.lane.b32.xlu0 %v487, 16
      %v924 = vpop.permute.xlu0 %923
      %925 = vrot.lane.b32.xlu0 %v489, 16
      %v926 = vpop.permute.xlu0 %925
      %927 = vrot.lane.b32.xlu0 %v492, 16
      %v928 = vpop.permute.xlu0 %927
      %929 = vrot.lane.b32.xlu0 %v494, 16
      %v930 = vpop.permute.xlu0 %929
      %931 = vrot.lane.b32.xlu0 %v868, 16
      %v932 = vpop.permute.xlu0 %931
      %933 = vrot.lane.b32.xlu0 %v870, 16
      %v934 = vpop.permute.xlu0 %933
      %v967 = vrot.slane %v364, 2
      %v968 = vrot.slane %v298, 2
      %v969 = vsel %vm591, %v967, %v968
      %v970 = vrot.slane %v381, 2
      %v971 = vsel %vm591, %v968, %v970
      %972 = vrot.lane.b32.xlu0 %v599, 20
      %v973 = vpop.permute.xlu0 %972
      %974 = vrot.lane.b32.xlu0 %v601, 20
      %v975 = vpop.permute.xlu0 %974
      %976 = vrot.lane.b32.xlu0 %v604, 20
      %v977 = vpop.permute.xlu0 %976
      %978 = vrot.lane.b32.xlu0 %v606, 20
      %v979 = vpop.permute.xlu0 %978
      %980 = vrot.lane.b32.xlu0 %v609, 20
      %v981 = vpop.permute.xlu0 %980
      %982 = vrot.lane.b32.xlu0 %v611, 20
      %v983 = vpop.permute.xlu0 %982
      %984 = vrot.lane.b32.xlu0 %v614, 20
      %v985 = vpop.permute.xlu0 %984
      %986 = vrot.lane.b32.xlu0 %v616, 20
      %v987 = vpop.permute.xlu0 %986
      %988 = vrot.lane.b32.xlu0 %v619, 20
      %v989 = vpop.permute.xlu0 %988
      %990 = vrot.lane.b32.xlu0 %v621, 20
      %v991 = vpop.permute.xlu0 %990
      %992 = vrot.lane.b32.xlu0 %v624, 20
      %v993 = vpop.permute.xlu0 %992
      %994 = vrot.lane.b32.xlu0 %v626, 20
      %v995 = vpop.permute.xlu0 %994
      %996 = vrot.lane.b32.xlu0 %v629, 20
      %v997 = vpop.permute.xlu0 %996
      %998 = vrot.lane.b32.xlu0 %v631, 20
      %v999 = vpop.permute.xlu0 %998
      %1000 = vrot.lane.b32.xlu0 %v634, 20
      %v1001 = vpop.permute.xlu0 %1000
      %1002 = vrot.lane.b32.xlu0 %v636, 20
      %v1003 = vpop.permute.xlu0 %1002
      %1004 = vrot.lane.b32.xlu0 %v639, 20
      %v1005 = vpop.permute.xlu0 %1004
      %1006 = vrot.lane.b32.xlu0 %v641, 20
      %v1007 = vpop.permute.xlu0 %1006
      %1008 = vrot.lane.b32.xlu0 %v644, 20
      %v1009 = vpop.permute.xlu0 %1008
      %1010 = vrot.lane.b32.xlu0 %v646, 20
      %v1011 = vpop.permute.xlu0 %1010
      %1012 = vrot.lane.b32.xlu0 %v649, 20
      %v1013 = vpop.permute.xlu0 %1012
      %1014 = vrot.lane.b32.xlu0 %v651, 20
      %v1015 = vpop.permute.xlu0 %1014
      %1016 = vrot.lane.b32.xlu0 %v654, 20
      %v1017 = vpop.permute.xlu0 %1016
      %1018 = vrot.lane.b32.xlu0 %v656, 20
      %v1019 = vpop.permute.xlu0 %1018
      %1020 = vrot.lane.b32.xlu0 %v659, 20
      %v1021 = vpop.permute.xlu0 %1020
      %1022 = vrot.lane.b32.xlu0 %v661, 20
      %v1023 = vpop.permute.xlu0 %1022
      %1024 = vrot.lane.b32.xlu0 %v664, 20
      %v1025 = vpop.permute.xlu0 %1024
      %1026 = vrot.lane.b32.xlu0 %v666, 20
      %v1027 = vpop.permute.xlu0 %1026
      %1028 = vrot.lane.b32.xlu0 %v669, 20
      %v1029 = vpop.permute.xlu0 %1028
      %1030 = vrot.lane.b32.xlu0 %v671, 20
      %v1031 = vpop.permute.xlu0 %1030
      %1032 = vrot.lane.b32.xlu0 %v969, 20
      %v1033 = vpop.permute.xlu0 %1032
      %1034 = vrot.lane.b32.xlu0 %v971, 20
      %v1035 = vpop.permute.xlu0 %1034
      %1068 = vrot.lane.b32.xlu0 %v350, 24
      %v1069 = vpop.permute.xlu0 %1068
      %1070 = vrot.lane.b32.xlu0 %v256, 24
      %v1071 = vpop.permute.xlu0 %1070
      %1072 = vrot.lane.b32.xlu0 %v351, 24
      %v1073 = vpop.permute.xlu0 %1072
      %1074 = vrot.lane.b32.xlu0 %v259, 24
      %v1075 = vpop.permute.xlu0 %1074
      %1076 = vrot.lane.b32.xlu0 %v352, 24
      %v1077 = vpop.permute.xlu0 %1076
      %1078 = vrot.lane.b32.xlu0 %v262, 24
      %v1079 = vpop.permute.xlu0 %1078
      %1080 = vrot.lane.b32.xlu0 %v353, 24
      %v1081 = vpop.permute.xlu0 %1080
      %1082 = vrot.lane.b32.xlu0 %v265, 24
      %v1083 = vpop.permute.xlu0 %1082
      %1084 = vrot.lane.b32.xlu0 %v354, 24
      %v1085 = vpop.permute.xlu0 %1084
      %1086 = vrot.lane.b32.xlu0 %v268, 24
      %v1087 = vpop.permute.xlu0 %1086
      %1088 = vrot.lane.b32.xlu0 %v355, 24
      %v1089 = vpop.permute.xlu0 %1088
      %1090 = vrot.lane.b32.xlu0 %v271, 24
      %v1091 = vpop.permute.xlu0 %1090
      %1092 = vrot.lane.b32.xlu0 %v356, 24
      %v1093 = vpop.permute.xlu0 %1092
      %1094 = vrot.lane.b32.xlu0 %v274, 24
      %v1095 = vpop.permute.xlu0 %1094
      %1096 = vrot.lane.b32.xlu0 %v357, 24
      %v1097 = vpop.permute.xlu0 %1096
      %1098 = vrot.lane.b32.xlu0 %v277, 24
      %v1099 = vpop.permute.xlu0 %1098
      %1100 = vrot.lane.b32.xlu0 %v358, 24
      %v1101 = vpop.permute.xlu0 %1100
      %1102 = vrot.lane.b32.xlu0 %v280, 24
      %v1103 = vpop.permute.xlu0 %1102
      %1104 = vrot.lane.b32.xlu0 %v359, 24
      %v1105 = vpop.permute.xlu0 %1104
      %1106 = vrot.lane.b32.xlu0 %v283, 24
      %v1107 = vpop.permute.xlu0 %1106
      %1108 = vrot.lane.b32.xlu0 %v360, 24
      %v1109 = vpop.permute.xlu0 %1108
      %1110 = vrot.lane.b32.xlu0 %v286, 24
      %v1111 = vpop.permute.xlu0 %1110
      %1112 = vrot.lane.b32.xlu0 %v361, 24
      %v1113 = vpop.permute.xlu0 %1112
      %1114 = vrot.lane.b32.xlu0 %v289, 24
      %v1115 = vpop.permute.xlu0 %1114
      %1116 = vrot.lane.b32.xlu0 %v362, 24
      %v1117 = vpop.permute.xlu0 %1116
      %1118 = vrot.lane.b32.xlu0 %v292, 24
      %v1119 = vpop.permute.xlu0 %1118
      %1120 = vrot.lane.b32.xlu0 %v363, 24
      %v1121 = vpop.permute.xlu0 %1120
      %1122 = vrot.lane.b32.xlu0 %v295, 24
      %v1123 = vpop.permute.xlu0 %1122
      %1124 = vrot.lane.b32.xlu0 %v364, 24
      %v1125 = vpop.permute.xlu0 %1124
      %1126 = vrot.lane.b32.xlu0 %v298, 24
      %v1127 = vpop.permute.xlu0 %1126
      %1128 = vrot.lane.b32.xlu0 %v348, 24
      %v1129 = vpop.permute.xlu0 %1128
      %1130 = vrot.lane.b32.xlu0 %v250, 24
      %v1131 = vpop.permute.xlu0 %1130
      %1164 = vrot.lane.b32.xlu0 %v427, 28
      %v1165 = vpop.permute.xlu0 %1164
      %1166 = vrot.lane.b32.xlu0 %v429, 28
      %v1167 = vpop.permute.xlu0 %1166
      %1168 = vrot.lane.b32.xlu0 %v432, 28
      %v1169 = vpop.permute.xlu0 %1168
      %1170 = vrot.lane.b32.xlu0 %v434, 28
      %v1171 = vpop.permute.xlu0 %1170
      %1172 = vrot.lane.b32.xlu0 %v437, 28
      %v1173 = vpop.permute.xlu0 %1172
      %1174 = vrot.lane.b32.xlu0 %v439, 28
      %v1175 = vpop.permute.xlu0 %1174
      %1176 = vrot.lane.b32.xlu0 %v442, 28
      %v1177 = vpop.permute.xlu0 %1176
      %1178 = vrot.lane.b32.xlu0 %v444, 28
      %v1179 = vpop.permute.xlu0 %1178
      %1180 = vrot.lane.b32.xlu0 %v447, 28
      %v1181 = vpop.permute.xlu0 %1180
      %1182 = vrot.lane.b32.xlu0 %v449, 28
      %v1183 = vpop.permute.xlu0 %1182
      %1184 = vrot.lane.b32.xlu0 %v452, 28
      %v1185 = vpop.permute.xlu0 %1184
      %1186 = vrot.lane.b32.xlu0 %v454, 28
      %v1187 = vpop.permute.xlu0 %1186
      %1188 = vrot.lane.b32.xlu0 %v457, 28
      %v1189 = vpop.permute.xlu0 %1188
      %1190 = vrot.lane.b32.xlu0 %v459, 28
      %v1191 = vpop.permute.xlu0 %1190
      %1192 = vrot.lane.b32.xlu0 %v462, 28
      %v1193 = vpop.permute.xlu0 %1192
      %1194 = vrot.lane.b32.xlu0 %v464, 28
      %v1195 = vpop.permute.xlu0 %1194
      %1196 = vrot.lane.b32.xlu0 %v467, 28
      %v1197 = vpop.permute.xlu0 %1196
      %1198 = vrot.lane.b32.xlu0 %v469, 28
      %v1199 = vpop.permute.xlu0 %1198
      %1200 = vrot.lane.b32.xlu0 %v472, 28
      %v1201 = vpop.permute.xlu0 %1200
      %1202 = vrot.lane.b32.xlu0 %v474, 28
      %v1203 = vpop.permute.xlu0 %1202
      %1204 = vrot.lane.b32.xlu0 %v477, 28
      %v1205 = vpop.permute.xlu0 %1204
      %1206 = vrot.lane.b32.xlu0 %v479, 28
      %v1207 = vpop.permute.xlu0 %1206
      %1208 = vrot.lane.b32.xlu0 %v482, 28
      %v1209 = vpop.permute.xlu0 %1208
      %1210 = vrot.lane.b32.xlu0 %v484, 28
      %v1211 = vpop.permute.xlu0 %1210
      %1212 = vrot.lane.b32.xlu0 %v487, 28
      %v1213 = vpop.permute.xlu0 %1212
      %1214 = vrot.lane.b32.xlu0 %v489, 28
      %v1215 = vpop.permute.xlu0 %1214
      %1216 = vrot.lane.b32.xlu0 %v492, 28
      %v1217 = vpop.permute.xlu0 %1216
      %1218 = vrot.lane.b32.xlu0 %v494, 28
      %v1219 = vpop.permute.xlu0 %1218
      %1220 = vrot.lane.b32.xlu0 %v868, 28
      %v1221 = vpop.permute.xlu0 %1220
      %1222 = vrot.lane.b32.xlu0 %v870, 28
      %v1223 = vpop.permute.xlu0 %1222
      %1224 = vrot.lane.b32.xlu0 %v417, 28
      %v1225 = vpop.permute.xlu0 %1224
      %1226 = vrot.lane.b32.xlu0 %v419, 28
      %v1227 = vpop.permute.xlu0 %1226
      %1260 = vrot.lane.b32.xlu0 %v604, 32
      %v1261 = vpop.permute.xlu0 %1260
      %1262 = vrot.lane.b32.xlu0 %v606, 32
      %v1263 = vpop.permute.xlu0 %1262
      %1264 = vrot.lane.b32.xlu0 %v609, 32
      %v1265 = vpop.permute.xlu0 %1264
      %1266 = vrot.lane.b32.xlu0 %v611, 32
      %v1267 = vpop.permute.xlu0 %1266
      %1268 = vrot.lane.b32.xlu0 %v614, 32
      %v1269 = vpop.permute.xlu0 %1268
      %1270 = vrot.lane.b32.xlu0 %v616, 32
      %v1271 = vpop.permute.xlu0 %1270
      %1272 = vrot.lane.b32.xlu0 %v619, 32
      %v1273 = vpop.permute.xlu0 %1272
      %1274 = vrot.lane.b32.xlu0 %v621, 32
      %v1275 = vpop.permute.xlu0 %1274
      %1276 = vrot.lane.b32.xlu0 %v624, 32
      %v1277 = vpop.permute.xlu0 %1276
      %1278 = vrot.lane.b32.xlu0 %v626, 32
      %v1279 = vpop.permute.xlu0 %1278
      %1280 = vrot.lane.b32.xlu0 %v629, 32
      %v1281 = vpop.permute.xlu0 %1280
      %1282 = vrot.lane.b32.xlu0 %v631, 32
      %v1283 = vpop.permute.xlu0 %1282
      %1284 = vrot.lane.b32.xlu0 %v634, 32
      %v1285 = vpop.permute.xlu0 %1284
      %1286 = vrot.lane.b32.xlu0 %v636, 32
      %v1287 = vpop.permute.xlu0 %1286
      %1288 = vrot.lane.b32.xlu0 %v639, 32
      %v1289 = vpop.permute.xlu0 %1288
      %1290 = vrot.lane.b32.xlu0 %v641, 32
      %v1291 = vpop.permute.xlu0 %1290
      %1292 = vrot.lane.b32.xlu0 %v644, 32
      %v1293 = vpop.permute.xlu0 %1292
      %1294 = vrot.lane.b32.xlu0 %v646, 32
      %v1295 = vpop.permute.xlu0 %1294
      %1296 = vrot.lane.b32.xlu0 %v649, 32
      %v1297 = vpop.permute.xlu0 %1296
      %1298 = vrot.lane.b32.xlu0 %v651, 32
      %v1299 = vpop.permute.xlu0 %1298
      %1300 = vrot.lane.b32.xlu0 %v654, 32
      %v1301 = vpop.permute.xlu0 %1300
      %1302 = vrot.lane.b32.xlu0 %v656, 32
      %v1303 = vpop.permute.xlu0 %1302
      %1304 = vrot.lane.b32.xlu0 %v659, 32
      %v1305 = vpop.permute.xlu0 %1304
      %1306 = vrot.lane.b32.xlu0 %v661, 32
      %v1307 = vpop.permute.xlu0 %1306
      %1308 = vrot.lane.b32.xlu0 %v664, 32
      %v1309 = vpop.permute.xlu0 %1308
      %1310 = vrot.lane.b32.xlu0 %v666, 32
      %v1311 = vpop.permute.xlu0 %1310
      %1312 = vrot.lane.b32.xlu0 %v669, 32
      %v1313 = vpop.permute.xlu0 %1312
      %1314 = vrot.lane.b32.xlu0 %v671, 32
      %v1315 = vpop.permute.xlu0 %1314
      %1316 = vrot.lane.b32.xlu0 %v969, 32
      %v1317 = vpop.permute.xlu0 %1316
      %1318 = vrot.lane.b32.xlu0 %v971, 32
      %v1319 = vpop.permute.xlu0 %1318
      %1320 = vrot.lane.b32.xlu0 %v594, 32
      %v1321 = vpop.permute.xlu0 %1320
      %1322 = vrot.lane.b32.xlu0 %v596, 32
      %v1323 = vpop.permute.xlu0 %1322
      %vm1356 = vcmask 31744
      %v1357 = vsel %vm1356, %v348, %v496
      %v1358 = vsel %vm1356, %v250, %v498
      %v1359 = vsel %vm1356, %v349, %v500
      %v1360 = vsel %vm1356, %v253, %v502
      %v1361 = vsel %vm1356, %v350, %v504
      %v1362 = vsel %vm1356, %v256, %v506
      %v1363 = vsel %vm1356, %v351, %v508
      %v1364 = vsel %vm1356, %v259, %v510
      %v1365 = vsel %vm1356, %v352, %v512
      %v1366 = vsel %vm1356, %v262, %v514
      %v1367 = vsel %vm1356, %v353, %v516
      %v1368 = vsel %vm1356, %v265, %v518
      %v1369 = vsel %vm1356, %v354, %v520
      %v1370 = vsel %vm1356, %v268, %v522
      %v1371 = vsel %vm1356, %v355, %v524
      %v1372 = vsel %vm1356, %v271, %v526
      %v1373 = vsel %vm1356, %v356, %v528
      %v1374 = vsel %vm1356, %v274, %v530
      %v1375 = vsel %vm1356, %v357, %v532
      %v1376 = vsel %vm1356, %v277, %v534
      %v1377 = vsel %vm1356, %v358, %v536
      %v1378 = vsel %vm1356, %v280, %v538
      %v1379 = vsel %vm1356, %v359, %v540
      %v1380 = vsel %vm1356, %v283, %v542
      %v1381 = vsel %vm1356, %v360, %v544
      %v1382 = vsel %vm1356, %v286, %v546
      %v1383 = vsel %vm1356, %v361, %v548
      %v1384 = vsel %vm1356, %v289, %v550
      %v1385 = vsel %vm1356, %v362, %v552
      %v1386 = vsel %vm1356, %v292, %v554
      %v1387 = vsel %vm1356, %v363, %v556
      %v1388 = vsel %vm1356, %v295, %v558
      %vm1389 = vcmask 64512
      %v1390 = vsel %vm1389, %v1357, %v673
      %v1391 = vsel %vm1389, %v1358, %v675
      %v1392 = vsel %vm1389, %v1359, %v677
      %v1393 = vsel %vm1389, %v1360, %v679
      %v1394 = vsel %vm1389, %v1361, %v681
      %v1395 = vsel %vm1389, %v1362, %v683
      %v1396 = vsel %vm1389, %v1363, %v685
      %v1397 = vsel %vm1389, %v1364, %v687
      %v1398 = vsel %vm1389, %v1365, %v689
      %v1399 = vsel %vm1389, %v1366, %v691
      %v1400 = vsel %vm1389, %v1367, %v693
      %v1401 = vsel %vm1389, %v1368, %v695
      %v1402 = vsel %vm1389, %v1369, %v697
      %v1403 = vsel %vm1389, %v1370, %v699
      %v1404 = vsel %vm1389, %v1371, %v701
      %v1405 = vsel %vm1389, %v1372, %v703
      %v1406 = vsel %vm1389, %v1373, %v705
      %v1407 = vsel %vm1389, %v1374, %v707
      %v1408 = vsel %vm1389, %v1375, %v709
      %v1409 = vsel %vm1389, %v1376, %v711
      %v1410 = vsel %vm1389, %v1377, %v713
      %v1411 = vsel %vm1389, %v1378, %v715
      %v1412 = vsel %vm1389, %v1379, %v717
      %v1413 = vsel %vm1389, %v1380, %v719
      %v1414 = vsel %vm1389, %v1381, %v721
      %v1415 = vsel %vm1389, %v1382, %v723
      %v1416 = vsel %vm1389, %v1383, %v725
      %v1417 = vsel %vm1389, %v1384, %v727
      %v1418 = vsel %vm1389, %v1385, %v729
      %v1419 = vsel %vm1389, %v1386, %v731
      %v1420 = vsel %vm1389, %v1387, %v733
      %v1421 = vsel %vm1389, %v1388, %v735
      %vm1422 = vcmask 97280
      %v1423 = vsel %vm1422, %v1390, %v770
      %v1424 = vsel %vm1422, %v1391, %v772
      %v1425 = vsel %vm1422, %v1392, %v774
      %v1426 = vsel %vm1422, %v1393, %v776
      %v1427 = vsel %vm1422, %v1394, %v778
      %v1428 = vsel %vm1422, %v1395, %v780
      %v1429 = vsel %vm1422, %v1396, %v782
      %v1430 = vsel %vm1422, %v1397, %v784
      %v1431 = vsel %vm1422, %v1398, %v786
      %v1432 = vsel %vm1422, %v1399, %v788
      %v1433 = vsel %vm1422, %v1400, %v790
      %v1434 = vsel %vm1422, %v1401, %v792
      %v1435 = vsel %vm1422, %v1402, %v794
      %v1436 = vsel %vm1422, %v1403, %v796
      %v1437 = vsel %vm1422, %v1404, %v798
      %v1438 = vsel %vm1422, %v1405, %v800
      %v1439 = vsel %vm1422, %v1406, %v802
      %v1440 = vsel %vm1422, %v1407, %v804
      %v1441 = vsel %vm1422, %v1408, %v806
      %v1442 = vsel %vm1422, %v1409, %v808
      %v1443 = vsel %vm1422, %v1410, %v810
      %v1444 = vsel %vm1422, %v1411, %v812
      %v1445 = vsel %vm1422, %v1412, %v814
      %v1446 = vsel %vm1422, %v1413, %v816
      %v1447 = vsel %vm1422, %v1414, %v818
      %v1448 = vsel %vm1422, %v1415, %v820
      %v1449 = vsel %vm1422, %v1416, %v822
      %v1450 = vsel %vm1422, %v1417, %v824
      %v1451 = vsel %vm1422, %v1418, %v826
      %v1452 = vsel %vm1422, %v1419, %v828
      %v1453 = vsel %vm1422, %v1420, %v830
      %v1454 = vsel %vm1422, %v1421, %v832
      %vm1455 = vcmask 130048
      %v1456 = vsel %vm1455, %v1423, %v872
      %v1457 = vsel %vm1455, %v1424, %v874
      %v1458 = vsel %vm1455, %v1425, %v876
      %v1459 = vsel %vm1455, %v1426, %v878
      %v1460 = vsel %vm1455, %v1427, %v880
      %v1461 = vsel %vm1455, %v1428, %v882
      %v1462 = vsel %vm1455, %v1429, %v884
      %v1463 = vsel %vm1455, %v1430, %v886
      %v1464 = vsel %vm1455, %v1431, %v888
      %v1465 = vsel %vm1455, %v1432, %v890
      %v1466 = vsel %vm1455, %v1433, %v892
      %v1467 = vsel %vm1455, %v1434, %v894
      %v1468 = vsel %vm1455, %v1435, %v896
      %v1469 = vsel %vm1455, %v1436, %v898
      %v1470 = vsel %vm1455, %v1437, %v900
      %v1471 = vsel %vm1455, %v1438, %v902
      %v1472 = vsel %vm1455, %v1439, %v904
      %v1473 = vsel %vm1455, %v1440, %v906
      %v1474 = vsel %vm1455, %v1441, %v908
      %v1475 = vsel %vm1455, %v1442, %v910
      %v1476 = vsel %vm1455, %v1443, %v912
      %v1477 = vsel %vm1455, %v1444, %v914
      %v1478 = vsel %vm1455, %v1445, %v916
      %v1479 = vsel %vm1455, %v1446, %v918
      %v1480 = vsel %vm1455, %v1447, %v920
      %v1481 = vsel %vm1455, %v1448, %v922
      %v1482 = vsel %vm1455, %v1449, %v924
      %v1483 = vsel %vm1455, %v1450, %v926
      %v1484 = vsel %vm1455, %v1451, %v928
      %v1485 = vsel %vm1455, %v1452, %v930
      %v1486 = vsel %vm1455, %v1453, %v932
      %v1487 = vsel %vm1455, %v1454, %v934
      %vm1488 = vcmask 162816
      %v1489 = vsel %vm1488, %v1456, %v973
      %v1490 = vsel %vm1488, %v1457, %v975
      %v1491 = vsel %vm1488, %v1458, %v977
      %v1492 = vsel %vm1488, %v1459, %v979
      %v1493 = vsel %vm1488, %v1460, %v981
      %v1494 = vsel %vm1488, %v1461, %v983
      %v1495 = vsel %vm1488, %v1462, %v985
      %v1496 = vsel %vm1488, %v1463, %v987
      %v1497 = vsel %vm1488, %v1464, %v989
      %v1498 = vsel %vm1488, %v1465, %v991
      %v1499 = vsel %vm1488, %v1466, %v993
      %v1500 = vsel %vm1488, %v1467, %v995
      %v1501 = vsel %vm1488, %v1468, %v997
      %v1502 = vsel %vm1488, %v1469, %v999
      %v1503 = vsel %vm1488, %v1470, %v1001
      %v1504 = vsel %vm1488, %v1471, %v1003
      %v1505 = vsel %vm1488, %v1472, %v1005
      %v1506 = vsel %vm1488, %v1473, %v1007
      %v1507 = vsel %vm1488, %v1474, %v1009
      %v1508 = vsel %vm1488, %v1475, %v1011
      %v1509 = vsel %vm1488, %v1476, %v1013
      %v1510 = vsel %vm1488, %v1477, %v1015
      %v1511 = vsel %vm1488, %v1478, %v1017
      %v1512 = vsel %vm1488, %v1479, %v1019
      %v1513 = vsel %vm1488, %v1480, %v1021
      %v1514 = vsel %vm1488, %v1481, %v1023
      %v1515 = vsel %vm1488, %v1482, %v1025
      %v1516 = vsel %vm1488, %v1483, %v1027
      %v1517 = vsel %vm1488, %v1484, %v1029
      %v1518 = vsel %vm1488, %v1485, %v1031
      %v1519 = vsel %vm1488, %v1486, %v1033
      %v1520 = vsel %vm1488, %v1487, %v1035
      %vm1521 = vcmask 195584
      %v1522 = vsel %vm1521, %v1489, %v1069
      %v1523 = vsel %vm1521, %v1490, %v1071
      %v1524 = vsel %vm1521, %v1491, %v1073
      %v1525 = vsel %vm1521, %v1492, %v1075
      %v1526 = vsel %vm1521, %v1493, %v1077
      %v1527 = vsel %vm1521, %v1494, %v1079
      %v1528 = vsel %vm1521, %v1495, %v1081
      %v1529 = vsel %vm1521, %v1496, %v1083
      %v1530 = vsel %vm1521, %v1497, %v1085
      %v1531 = vsel %vm1521, %v1498, %v1087
      %v1532 = vsel %vm1521, %v1499, %v1089
      %v1533 = vsel %vm1521, %v1500, %v1091
      %v1534 = vsel %vm1521, %v1501, %v1093
      %v1535 = vsel %vm1521, %v1502, %v1095
      %v1536 = vsel %vm1521, %v1503, %v1097
      %v1537 = vsel %vm1521, %v1504, %v1099
      %v1538 = vsel %vm1521, %v1505, %v1101
      %v1539 = vsel %vm1521, %v1506, %v1103
      %v1540 = vsel %vm1521, %v1507, %v1105
      %v1541 = vsel %vm1521, %v1508, %v1107
      %v1542 = vsel %vm1521, %v1509, %v1109
      %v1543 = vsel %vm1521, %v1510, %v1111
      %v1544 = vsel %vm1521, %v1511, %v1113
      %v1545 = vsel %vm1521, %v1512, %v1115
      %v1546 = vsel %vm1521, %v1513, %v1117
      %v1547 = vsel %vm1521, %v1514, %v1119
      %v1548 = vsel %vm1521, %v1515, %v1121
      %v1549 = vsel %vm1521, %v1516, %v1123
      %v1550 = vsel %vm1521, %v1517, %v1125
      %v1551 = vsel %vm1521, %v1518, %v1127
      %v1552 = vsel %vm1521, %v1519, %v1129
      %v1553 = vsel %vm1521, %v1520, %v1131
      %vm1554 = vcmask 228352
      %v1555 = vsel %vm1554, %v1522, %v1165
      %v1556 = vsel %vm1554, %v1523, %v1167
      %v1557 = vsel %vm1554, %v1524, %v1169
      %v1558 = vsel %vm1554, %v1525, %v1171
      %v1559 = vsel %vm1554, %v1526, %v1173
      %v1560 = vsel %vm1554, %v1527, %v1175
      %v1561 = vsel %vm1554, %v1528, %v1177
      %v1562 = vsel %vm1554, %v1529, %v1179
      %v1563 = vsel %vm1554, %v1530, %v1181
      %v1564 = vsel %vm1554, %v1531, %v1183
      %v1565 = vsel %vm1554, %v1532, %v1185
      %v1566 = vsel %vm1554, %v1533, %v1187
      %v1567 = vsel %vm1554, %v1534, %v1189
      %v1568 = vsel %vm1554, %v1535, %v1191
      %v1569 = vsel %vm1554, %v1536, %v1193
      %v1570 = vsel %vm1554, %v1537, %v1195
      %v1571 = vsel %vm1554, %v1538, %v1197
      %v1572 = vsel %vm1554, %v1539, %v1199
      %v1573 = vsel %vm1554, %v1540, %v1201
      %v1574 = vsel %vm1554, %v1541, %v1203
      %v1575 = vsel %vm1554, %v1542, %v1205
      %v1576 = vsel %vm1554, %v1543, %v1207
      %v1577 = vsel %vm1554, %v1544, %v1209
      %v1578 = vsel %vm1554, %v1545, %v1211
      %v1579 = vsel %vm1554, %v1546, %v1213
      %v1580 = vsel %vm1554, %v1547, %v1215
      %v1581 = vsel %vm1554, %v1548, %v1217
      %v1582 = vsel %vm1554, %v1549, %v1219
      %v1583 = vsel %vm1554, %v1550, %v1221
      %v1584 = vsel %vm1554, %v1551, %v1223
      %v1585 = vsel %vm1554, %v1552, %v1225
      %v1586 = vsel %vm1554, %v1553, %v1227
      %vm1587 = vcmask 261120
      %v1588 = vsel %vm1587, %v1555, %v1261
      %v1589 = vsel %vm1587, %v1556, %v1263
      %v1590 = vsel %vm1587, %v1557, %v1265
      %v1591 = vsel %vm1587, %v1558, %v1267
      %v1592 = vsel %vm1587, %v1559, %v1269
      %v1593 = vsel %vm1587, %v1560, %v1271
      %v1594 = vsel %vm1587, %v1561, %v1273
      %v1595 = vsel %vm1587, %v1562, %v1275
      %v1596 = vsel %vm1587, %v1563, %v1277
      %v1597 = vsel %vm1587, %v1564, %v1279
      %v1598 = vsel %vm1587, %v1565, %v1281
      %v1599 = vsel %vm1587, %v1566, %v1283
      %v1600 = vsel %vm1587, %v1567, %v1285
      %v1601 = vsel %vm1587, %v1568, %v1287
      %v1602 = vsel %vm1587, %v1569, %v1289
      %v1603 = vsel %vm1587, %v1570, %v1291
      %v1604 = vsel %vm1587, %v1571, %v1293
      %v1605 = vsel %vm1587, %v1572, %v1295
      %v1606 = vsel %vm1587, %v1573, %v1297
      %v1607 = vsel %vm1587, %v1574, %v1299
      %v1608 = vsel %vm1587, %v1575, %v1301
      %v1609 = vsel %vm1587, %v1576, %v1303
      %v1610 = vsel %vm1587, %v1577, %v1305
      %v1611 = vsel %vm1587, %v1578, %v1307
      %v1612 = vsel %vm1587, %v1579, %v1309
      %v1613 = vsel %vm1587, %v1580, %v1311
      %v1614 = vsel %vm1587, %v1581, %v1313
      %v1615 = vsel %vm1587, %v1582, %v1315
      %v1616 = vsel %vm1587, %v1583, %v1317
      %v1617 = vsel %vm1587, %v1584, %v1319
      %v1618 = vsel %vm1587, %v1585, %v1321
      %v1619 = vsel %vm1587, %v1586, %v1323
      %v1620 = vpack.c.bf16 %v1589, %v1588
      %v1621 = vpack.c.bf16 %v1591, %v1590
      %v1622 = vpack.c.bf16 %v1593, %v1592
      %v1623 = vpack.c.bf16 %v1595, %v1594
      %v1624 = vpack.c.bf16 %v1597, %v1596
      %v1625 = vpack.c.bf16 %v1599, %v1598
      %v1626 = vpack.c.bf16 %v1601, %v1600
      %v1627 = vpack.c.bf16 %v1603, %v1602
      %v1628 = vpack.c.bf16 %v1605, %v1604
      %v1629 = vpack.c.bf16 %v1607, %v1606
      %v1630 = vpack.c.bf16 %v1609, %v1608
      %v1631 = vpack.c.bf16 %v1611, %v1610
      %v1632 = vpack.c.bf16 %v1613, %v1612
      %v1633 = vpack.c.bf16 %v1615, %v1614
      %v1634 = vpack.c.bf16 %v1617, %v1616
      %v1635 = vpack.c.bf16 %v1619, %v1618
      %v1636 = vld [vmem:[%s1] sm:$0xf]
      %v1637 = vld [vmem:[%s1 + $0x4] sm:$0xf]
      %v1638 = vld [vmem:[%s1 + $0x8] sm:$0xf]
      %v1639 = vld [vmem:[%s1 + $0xc] sm:$0xf]
      %v1640 = vld [vmem:[%s1 + $0x10] sm:$0x3]
      %v1646 = vunpack.c.l.b16 %v1636
      %v1647 = vunpack.c.l.b16 %v1637
      %v1648 = vunpack.c.l.b16 %v1638
      %v1649 = vunpack.c.l.b16 %v1639
      %v1650 = vunpack.c.l.b16 %v1640
      %v1651 = vpack.c.b16 %v1647, %v1646
      %v1652 = vpack.c.b16 %v1649, %v1648
      %v1653 = vpack.c.b16 %v1650, %v1650
      %vm1656 = vcmask 293888
      %v1658 = vsel %vm1656, %v1620, 0
      %v1661 = vsel %vm1656, %v1621, 0
      %v1664 = vsel %vm1656, %v1622, 0
      %v1667 = vsel %vm1656, %v1623, 0
      %v1670 = vsel %vm1656, %v1624, 0
      %v1673 = vsel %vm1656, %v1625, 0
      %v1676 = vsel %vm1656, %v1626, 0
      %v1679 = vsel %vm1656, %v1627, 0
      %v1682 = vsel %vm1656, %v1628, 0
      %v1685 = vsel %vm1656, %v1629, 0
      %v1688 = vsel %vm1656, %v1630, 0
      %v1691 = vsel %vm1656, %v1631, 0
      %v1694 = vsel %vm1656, %v1632, 0
      %v1697 = vsel %vm1656, %v1633, 0
      %v1700 = vsel %vm1656, %v1634, 0
      %v1703 = vsel %vm1656, %v1635, 0
      %vm1705 = vcmask 1041408
      %v1707 = vsel %vm1705, %v1653, 0
      %1709 = vmatprep.subr.bf16.mxu0 0
      %1710 = vmatpush1.bf16.msra.mxu0 %v1651
      %1711 = vmatprep.subr.bf16.mxu0 0
      %1712 = vmatpush1.bf16.msra.mxu0 %v1652
      %1713 = vmatprep.subr.bf16.mxu0 0
      %1714 = vmatpush1.bf16.msra.mxu0 %v1707
      %1715 = vmatprep.subr.bf16.mxu0 0
      %1716 = vmatpush1.bf16.msra.mxu0 0
      %1717 = vmatprep.subr.bf16.mxu0 0
      %1718 = vmatpush1.bf16.msra.mxu0 0
      %1719 = vmatprep.subr.bf16.mxu0 0
      %1720 = vmatpush1.bf16.msra.mxu0 0
      %1721 = vmatprep.subr.bf16.mxu0 0
      %1722 = vmatpush1.bf16.msra.mxu0 0
      %1723 = vmatprep.subr.bf16.mxu0 0
      %1724 = vmatpush1.bf16.msra.mxu0 0
      %1725 = vmatprep.subr.bf16.mxu0 0
      %1726 = vmatpush1.bf16.msra.mxu0 0
      %1727 = vmatprep.subr.bf16.mxu0 0
      %1728 = vmatpush1.bf16.msra.mxu0 0
      %1729 = vmatprep.subr.bf16.mxu0 0
      %1730 = vmatpush1.bf16.msra.mxu0 0
      %1731 = vmatprep.subr.bf16.mxu0 0
      %1732 = vmatpush1.bf16.msra.mxu0 0
      %1733 = vmatprep.subr.bf16.mxu0 0
      %1734 = vmatpush1.bf16.msra.mxu0 0
      %1735 = vmatprep.subr.bf16.mxu0 0
      %1736 = vmatpush1.bf16.msra.mxu0 0
      %1737 = vmatprep.subr.bf16.mxu0 0
      %1738 = vmatpush1.bf16.msra.mxu0 0
      %1739 = vmatprep.subr.bf16.mxu0 0
      %1740 = vmatpush1.bf16.msra.mxu0 0
      %1741 = vmatprep.mubr.bf16.mxu0 0
      %1742 = vmatmul.mubr.bf16.gmra.mrb[0].mxu0 %v1658
      %v1743 = vpop.f32.mrb[0].mxu0
      %v1744 = vadd.f32 0.0, %v1743
      %v1745 = vpop.f32.mrb[0].mxu0
      %v1746 = vpop.f32.mrb[0].mxu0
      %v1747 = vadd.f32 0.0, %v1746
      %v1748 = vpop.f32.mrb[0].mxu0
      %1749 = vmatprep.mubr.bf16.mxu0 0
      %1750 = vmatmul.mubr.bf16.gmra.mrb[0].mxu0 %v1661
      %v1751 = vpop.f32.mrb[0].mxu0
      %v1752 = vadd.f32 0.0, %v1751
      %v1753 = vpop.f32.mrb[0].mxu0
      %v1754 = vpop.f32.mrb[0].mxu0
      %v1755 = vadd.f32 0.0, %v1754
      %v1756 = vpop.f32.mrb[0].mxu0
      %1757 = vmatprep.mubr.bf16.mxu0 0
      %1758 = vmatmul.mubr.bf16.gmra.mrb[0].mxu0 %v1664
      %v1759 = vpop.f32.mrb[0].mxu0
      %v1760 = vadd.f32 0.0, %v1759
      %v1761 = vpop.f32.mrb[0].mxu0
      %v1762 = vpop.f32.mrb[0].mxu0
      %v1763 = vadd.f32 0.0, %v1762
      %v1764 = vpop.f32.mrb[0].mxu0
      %1765 = vmatprep.mubr.bf16.mxu0 0
      %1766 = vmatmul.mubr.bf16.gmra.mrb[0].mxu0 %v1667
      %v1767 = vpop.f32.mrb[0].mxu0
      %v1768 = vadd.f32 0.0, %v1767
      %v1769 = vpop.f32.mrb[0].mxu0
      %v1770 = vpop.f32.mrb[0].mxu0
      %v1771 = vadd.f32 0.0, %v1770
      %v1772 = vpop.f32.mrb[0].mxu0
      %1773 = vmatprep.mubr.bf16.mxu0 0
      %1774 = vmatmul.mubr.bf16.gmra.mrb[0].mxu0 %v1670
      %v1775 = vpop.f32.mrb[0].mxu0
      %v1776 = vadd.f32 0.0, %v1775
      %v1777 = vpop.f32.mrb[0].mxu0
      %v1778 = vpop.f32.mrb[0].mxu0
      %v1779 = vadd.f32 0.0, %v1778
      %v1780 = vpop.f32.mrb[0].mxu0
      %1781 = vmatprep.mubr.bf16.mxu0 0
      %1782 = vmatmul.mubr.bf16.gmra.mrb[0].mxu0 %v1673
      %v1783 = vpop.f32.mrb[0].mxu0
      %v1784 = vadd.f32 0.0, %v1783
      %v1785 = vpop.f32.mrb[0].mxu0
      %v1786 = vpop.f32.mrb[0].mxu0
      %v1787 = vadd.f32 0.0, %v1786
      %v1788 = vpop.f32.mrb[0].mxu0
      %1789 = vmatprep.mubr.bf16.mxu0 0
      %1790 = vmatmul.mubr.bf16.gmra.mrb[0].mxu0 %v1676
      %v1791 = vpop.f32.mrb[0].mxu0
      %v1792 = vadd.f32 0.0, %v1791
      %v1793 = vpop.f32.mrb[0].mxu0
      %v1794 = vpop.f32.mrb[0].mxu0
      %v1795 = vadd.f32 0.0, %v1794
      %v1796 = vpop.f32.mrb[0].mxu0
      %1797 = vmatprep.mubr.bf16.mxu0 0
      %1798 = vmatmul.mubr.bf16.gmra.mrb[0].mxu0 %v1679
      %v1799 = vpop.f32.mrb[0].mxu0
      %v1800 = vadd.f32 0.0, %v1799
      %v1801 = vpop.f32.mrb[0].mxu0
      %v1802 = vpop.f32.mrb[0].mxu0
      %v1803 = vadd.f32 0.0, %v1802
      %v1804 = vpop.f32.mrb[0].mxu0
      %1805 = vmatprep.mubr.bf16.mxu0 0
      %1806 = vmatmul.mubr.bf16.gmra.mrb[0].mxu0 %v1682
      %v1807 = vpop.f32.mrb[0].mxu0
      %v1808 = vadd.f32 0.0, %v1807
      %v1809 = vpop.f32.mrb[0].mxu0
      %v1810 = vpop.f32.mrb[0].mxu0
      %v1811 = vadd.f32 0.0, %v1810
      %v1812 = vpop.f32.mrb[0].mxu0
      %1813 = vmatprep.mubr.bf16.mxu0 0
      %1814 = vmatmul.mubr.bf16.gmra.mrb[0].mxu0 %v1685
      %v1815 = vpop.f32.mrb[0].mxu0
      %v1816 = vadd.f32 0.0, %v1815
      %v1817 = vpop.f32.mrb[0].mxu0
      %v1818 = vpop.f32.mrb[0].mxu0
      %v1819 = vadd.f32 0.0, %v1818
      %v1820 = vpop.f32.mrb[0].mxu0
      %1821 = vmatprep.mubr.bf16.mxu0 0
      %1822 = vmatmul.mubr.bf16.gmra.mrb[0].mxu0 %v1688
      %v1823 = vpop.f32.mrb[0].mxu0
      %v1824 = vadd.f32 0.0, %v1823
      %v1825 = vpop.f32.mrb[0].mxu0
      %v1826 = vpop.f32.mrb[0].mxu0
      %v1827 = vadd.f32 0.0, %v1826
      %v1828 = vpop.f32.mrb[0].mxu0
      %1829 = vmatprep.mubr.bf16.mxu0 0
      %1830 = vmatmul.mubr.bf16.gmra.mrb[0].mxu0 %v1691
      %v1831 = vpop.f32.mrb[0].mxu0
      %v1832 = vadd.f32 0.0, %v1831
      %v1833 = vpop.f32.mrb[0].mxu0
      %v1834 = vpop.f32.mrb[0].mxu0
      %v1835 = vadd.f32 0.0, %v1834
      %v1836 = vpop.f32.mrb[0].mxu0
      %1837 = vmatprep.mubr.bf16.mxu0 0
      %1838 = vmatmul.mubr.bf16.gmra.mrb[0].mxu0 %v1694
      %v1839 = vpop.f32.mrb[0].mxu0
      %v1840 = vadd.f32 0.0, %v1839
      %v1841 = vpop.f32.mrb[0].mxu0
      %v1842 = vpop.f32.mrb[0].mxu0
      %v1843 = vadd.f32 0.0, %v1842
      %v1844 = vpop.f32.mrb[0].mxu0
      %1845 = vmatprep.mubr.bf16.mxu0 0
      %1846 = vmatmul.mubr.bf16.gmra.mrb[0].mxu0 %v1697
      %v1847 = vpop.f32.mrb[0].mxu0
      %v1848 = vadd.f32 0.0, %v1847
      %v1849 = vpop.f32.mrb[0].mxu0
      %v1850 = vpop.f32.mrb[0].mxu0
      %v1851 = vadd.f32 0.0, %v1850
      %v1852 = vpop.f32.mrb[0].mxu0
      %1853 = vmatprep.mubr.bf16.mxu0 0
      %1854 = vmatmul.mubr.bf16.gmra.mrb[0].mxu0 %v1700
      %v1855 = vpop.f32.mrb[0].mxu0
      %v1856 = vadd.f32 0.0, %v1855
      %v1857 = vpop.f32.mrb[0].mxu0
      %v1858 = vpop.f32.mrb[0].mxu0
      %v1859 = vadd.f32 0.0, %v1858
      %v1860 = vpop.f32.mrb[0].mxu0
      %1861 = vmatprep.mubr.bf16.mxu0 0
      %1862 = vmatmul.mubr.bf16.gmra.mrb[0].mxu0 %v1703
      %v1863 = vpop.f32.mrb[0].mxu0
      %v1864 = vadd.f32 0.0, %v1863
      %v1865 = vpop.f32.mrb[0].mxu0
      %v1866 = vpop.f32.mrb[0].mxu0
      %v1867 = vadd.f32 0.0, %v1866
      %v1868 = vpop.f32.mrb[0].mxu0
      %1869 = vdwg.mxu0
      %1870 = vst [vmem:[%s177] sm:$0xff] %v1744
      %1871 = vst [vmem:[%s177 + $0x8] sm:$0xff] %v1747
      %1872 = vst [vmem:[%s177 + $0x10] sm:$0xff] %v1752
      %1873 = vst [vmem:[%s177 + $0x18] sm:$0xff] %v1755
      %1874 = vst [vmem:[%s177 + $0x20] sm:$0xff] %v1760
      %1875 = vst [vmem:[%s177 + $0x28] sm:$0xff] %v1763
      %1876 = vst [vmem:[%s177 + $0x30] sm:$0xff] %v1768
      %1877 = vst [vmem:[%s177 + $0x38] sm:$0xff] %v1771
      %1878 = vst [vmem:[%s177 + $0x40] sm:$0xff] %v1776
      %1879 = vst [vmem:[%s177 + $0x48] sm:$0xff] %v1779
      %1880 = vst [vmem:[%s177 + $0x50] sm:$0xff] %v1784
      %1881 = vst [vmem:[%s177 + $0x58] sm:$0xff] %v1787
      %1882 = vst [vmem:[%s177 + $0x60] sm:$0xff] %v1792
      %1883 = vst [vmem:[%s177 + $0x68] sm:$0xff] %v1795
      %1884 = vst [vmem:[%s177 + $0x70] sm:$0xff] %v1800
      %1885 = vst [vmem:[%s177 + $0x78] sm:$0xff] %v1803
      %1886 = vst [vmem:[%s177 + $0x80] sm:$0xff] %v1808
      %1887 = vst [vmem:[%s177 + $0x88] sm:$0xff] %v1811
      %1888 = vst [vmem:[%s177 + $0x90] sm:$0xff] %v1816
      %1889 = vst [vmem:[%s177 + $0x98] sm:$0xff] %v1819
      %1890 = vst [vmem:[%s177 + $0xa0] sm:$0xff] %v1824
      %1891 = vst [vmem:[%s177 + $0xa8] sm:$0xff] %v1827
      %1892 = vst [vmem:[%s177 + $0xb0] sm:$0xff] %v1832
      %1893 = vst [vmem:[%s177 + $0xb8] sm:$0xff] %v1835
      %1894 = vst [vmem:[%s177 + $0xc0] sm:$0xff] %v1840
      %1895 = vst [vmem:[%s177 + $0xc8] sm:$0xff] %v1843
      %1896 = vst [vmem:[%s177 + $0xd0] sm:$0xff] %v1848
      %1897 = vst [vmem:[%s177 + $0xd8] sm:$0xff] %v1851
      %1898 = vst [vmem:[%s177 + $0xe0] sm:$0xff] %v1856
      %1899 = vst [vmem:[%s177 + $0xe8] sm:$0xff] %v1859
      %1900 = vst [vmem:[%s177 + $0xf0] sm:$0xff] %v1864
      %1901 = vst [vmem:[%s177 + $0xf8] sm:$0xff] %v1867
      %v1902 = vadd.f32 %v1744, %v1747
      %v1903 = vadd.f32 %v1902, %v1752
      %v1904 = vadd.f32 %v1903, %v1755
      %v1905 = vadd.f32 %v1904, %v1760
      %v1906 = vadd.f32 %v1905, %v1763
      %v1907 = vadd.f32 %v1906, %v1768
      %v1908 = vadd.f32 %v1907, %v1771
      %v1909 = vadd.f32 %v1908, %v1776
      %v1910 = vadd.f32 %v1909, %v1779
      %v1911 = vadd.f32 %v1910, %v1784
      %v1912 = vadd.f32 %v1911, %v1787
      %v1913 = vadd.f32 %v1912, %v1792
      %v1914 = vadd.f32 %v1913, %v1795
      %v1915 = vadd.f32 %v1914, %v1800
      %v1916 = vadd.f32 %v1915, %v1803
      %v1917 = vadd.f32 %v1916, %v1808
      %v1918 = vadd.f32 %v1917, %v1811
      %v1919 = vadd.f32 %v1918, %v1816
      %v1920 = vadd.f32 %v1919, %v1819
      %v1921 = vadd.f32 %v1920, %v1824
      %v1922 = vadd.f32 %v1921, %v1827
      %v1923 = vadd.f32 %v1922, %v1832
      %v1924 = vadd.f32 %v1923, %v1835
      %v1925 = vadd.f32 %v1924, %v1840
      %v1926 = vadd.f32 %v1925, %v1843
      %v1927 = vadd.f32 %v1926, %v1848
      %v1928 = vadd.f32 %v1927, %v1851
      %v1929 = vadd.f32 %v1928, %v1856
      %v1930 = vadd.f32 %v1929, %v1859
      %v1931 = vadd.f32 %v1930, %v1864
      %v1932 = vadd.f32 %v1931, %v1867
      %v1933 = vrot.slane %v1932, 4
      %v1934 = vadd.f32 %v1932, %v1933
      %v1935 = vrot.slane %v1934, 2
      %v1936 = vadd.f32 %v1934, %v1935
      %v1937 = vrot.slane %v1936, 1
      %v1938 = vadd.f32 %v1936, %v1937
      %v1939 = vmul.f32 %v1744, %v1744
      %v1940 = vmul.f32 %v1747, %v1747
      %v1941 = vmul.f32 %v1752, %v1752
      %v1942 = vmul.f32 %v1755, %v1755
      %v1943 = vmul.f32 %v1760, %v1760
      %v1944 = vmul.f32 %v1763, %v1763
      %v1945 = vmul.f32 %v1768, %v1768
      %v1946 = vmul.f32 %v1771, %v1771
      %v1947 = vmul.f32 %v1776, %v1776
      %v1948 = vmul.f32 %v1779, %v1779
      %v1949 = vmul.f32 %v1784, %v1784
      %v1950 = vmul.f32 %v1787, %v1787
      %v1951 = vmul.f32 %v1792, %v1792
      %v1952 = vmul.f32 %v1795, %v1795
      %v1953 = vmul.f32 %v1800, %v1800
      %v1954 = vmul.f32 %v1803, %v1803
      %v1955 = vmul.f32 %v1808, %v1808
      %v1956 = vmul.f32 %v1811, %v1811
      %v1957 = vmul.f32 %v1816, %v1816
      %v1958 = vmul.f32 %v1819, %v1819
      %v1959 = vmul.f32 %v1824, %v1824
      %v1960 = vmul.f32 %v1827, %v1827
      %v1961 = vmul.f32 %v1832, %v1832
      %v1962 = vmul.f32 %v1835, %v1835
      %v1963 = vmul.f32 %v1840, %v1840
      %v1964 = vmul.f32 %v1843, %v1843
      %v1965 = vmul.f32 %v1848, %v1848
      %v1966 = vmul.f32 %v1851, %v1851
      %v1967 = vmul.f32 %v1856, %v1856
      %v1968 = vmul.f32 %v1859, %v1859
      %v1969 = vmul.f32 %v1864, %v1864
      %v1970 = vmul.f32 %v1867, %v1867
      %v1971 = vadd.f32 %v1939, %v1940
      %v1972 = vadd.f32 %v1971, %v1941
      %v1973 = vadd.f32 %v1972, %v1942
      %v1974 = vadd.f32 %v1973, %v1943
      %v1975 = vadd.f32 %v1974, %v1944
      %v1976 = vadd.f32 %v1975, %v1945
      %v1977 = vadd.f32 %v1976, %v1946
      %v1978 = vadd.f32 %v1977, %v1947
      %v1979 = vadd.f32 %v1978, %v1948
      %v1980 = vadd.f32 %v1979, %v1949
      %v1981 = vadd.f32 %v1980, %v1950
      %v1982 = vadd.f32 %v1981, %v1951
      %v1983 = vadd.f32 %v1982, %v1952
      %v1984 = vadd.f32 %v1983, %v1953
      %v1985 = vadd.f32 %v1984, %v1954
      %v1986 = vadd.f32 %v1985, %v1955
      %v1987 = vadd.f32 %v1986, %v1956
      %v1988 = vadd.f32 %v1987, %v1957
      %v1989 = vadd.f32 %v1988, %v1958
      %v1990 = vadd.f32 %v1989, %v1959
      %v1991 = vadd.f32 %v1990, %v1960
      %v1992 = vadd.f32 %v1991, %v1961
      %v1993 = vadd.f32 %v1992, %v1962
      %v1994 = vadd.f32 %v1993, %v1963
      %v1995 = vadd.f32 %v1994, %v1964
      %v1996 = vadd.f32 %v1995, %v1965
      %v1997 = vadd.f32 %v1996, %v1966
      %v1998 = vadd.f32 %v1997, %v1967
      %v1999 = vadd.f32 %v1998, %v1968
      %v2000 = vadd.f32 %v1999, %v1969
      %v2001 = vadd.f32 %v2000, %v1970
      %v2002 = vrot.slane %v2001, 4
      %v2003 = vadd.f32 %v2001, %v2002
      %v2004 = vrot.slane %v2003, 2
      %v2005 = vadd.f32 %v2003, %v2004
      %v2006 = vrot.slane %v2005, 1
      %v2007 = vadd.f32 %v2005, %v2006
      %v2008 = vsel %vm248, %v1938, %v2007
      %v2009 = vsel %vm1705, %v2008, 0.0
      %2010 = vst [vmem:[%s181] sm:$0xff] %v2009
      %p2011 = scmp.lt.s32.totalorder %s15, 1
      %s2012 = scalar_select %p2011, %s15, 1
      %s2013 = smul.addr %s2012, 32
      %s2014 = smul.addr %s2013, 8
      %s2015 = scalar_lea.vmem %s2, %s2014
      %p2016 = scmp.lt.s32.totalorder %s15, 1
      %s2017 = scalar_select %p2016, %s15, 1
      %s2018 = smul.addr %s2017, 8
      %s2019 = scalar_lea.vmem %s3, %s2018
      // Predicated region
      $region29: #{conv_block_forward.2} parent=27 // pred_check
        %p2020 = pneg %p80
      $region30: #{conv_block_forward.2} parent=27 // pred_check_branch
        %2022 = sbr.rel (%p2020) target = $region32
      $region31: #{conv_block_forward.2} parent=27 // pred_region
        _
      $region32: #{conv_block_forward.2} parent=27 // pred_fallthru
        _
      // Predicated region
      $region33: #{conv_block_forward.2} parent=27 // pred_check
        %p2023 = pneg %p106
      $region34: #{conv_block_forward.2} parent=27 // pred_check_branch
        %2025 = sbr.rel (%p2023) target = $region36
      $region35: #{conv_block_forward.2} parent=27 // pred_region
        _
      $region36: #{conv_block_forward.2} parent=27 // pred_fallthru
        _
    $region28: #{conv_block_forward.2} parent=5 // pred_fallthru
      _
    %p2026 = scmp.le.s32.totalorder 2, %s10
    // Predicated region
    $region37: #{conv_block_forward.2} parent=5 // pred_check
      %p2027 = pneg %p2026
    $region38: #{conv_block_forward.2} parent=5 // pred_check_branch
      %2029 = sbr.rel (%p2027) target = $region40
    $region39: #{conv_block_forward.2} parent=5 // pred_region
      %s2030 = ssub.s32 %s10, 2
      // Predicated region
      $region41: #{conv_block_forward.2} parent=39 // pred_check
        %p2031 = pneg %p86
      $region42: #{conv_block_forward.2} parent=39 // pred_check_branch
        %2033 = sbr.rel (%p2031) target = $region44
      $region43: #{conv_block_forward.2} parent=39 // pred_region
        %p2034 = scmp.lt.s32.totalorder %s16, 1
        %s2035 = scalar_select %p2034, %s16, 1
        %s2036 = smul.addr %s2035, 32
        %s2037 = smul.addr %s2036, 8
        %s2038 = scalar_lea.vmem %s2, %s2037
      $region44: #{conv_block_forward.2} parent=39 // pred_fallthru
        _
      // Predicated region
      $region45: #{conv_block_forward.2} parent=39 // pred_check
        %p2039 = pneg %p112
      $region46: #{conv_block_forward.2} parent=39 // pred_check_branch
        %2041 = sbr.rel (%p2039) target = $region48
      $region47: #{conv_block_forward.2} parent=39 // pred_region
        %p2042 = scmp.lt.s32.totalorder %s16, 1
        %s2043 = scalar_select %p2042, %s16, 1
        %s2044 = smul.addr %s2043, 8
        %s2045 = scalar_lea.vmem %s3, %s2044
      $region48: #{conv_block_forward.2} parent=39 // pred_fallthru
        _
    $region40: #{conv_block_forward.2} parent=5 // pred_fallthru
      _
  $region6: #{conv_block_forward.2} parent=0 // loop_footer
    %s14 = sadd.s32 1, %s10
  $region7: #{conv_block_forward.2} parent=0 // loop_footer_branch
    %9 = sbr.rel target = $region3
  $region8: #{conv_block_forward.2} parent=0 // loop_exit
    _

</llo_original>
